<compile_context>
chip_gen: v6e
topology: v6e:2x2x1
jax: 0.10.0
libtpu: 0.0.40
codegen_flags: <defaults>
</compile_context>

<pallas_src>
import jax
import jax.numpy as jnp
from jax.experimental import pallas as pl
from jax.experimental.pallas import tpu as pltpu

LANE = 128
NEG_SLOPE = 0.2  # matches nn.LeakyReLU(0.2) in the module


def _round_up(x, m):
    return (x + m - 1) // m * m


def _leaky_relu(x, slope=NEG_SLOPE):
    return jnp.where(x > 0, x, slope * x)


def _make_decoder_kernel(n_layers):
    """Build a kernel for `n_layers` Linear layers.

    Ref order: z, yb_0..yb_{n-1}, w_0..w_{n-1}, out
      z    : (TB, lat_pad)      f32 activations for this batch tile
      yb_i : (TB, d_out_pad_i)  f32 per-sample bias = labels @ Wy_i.T + b_i
      w_i  : (d_in_pad_i, d_out_pad_i) bf16 z-part weights (pre-transposed)
    """

    def kernel(*refs):
        z_ref = refs[0]
        yb_refs = refs[1:1 + n_layers]
        w_refs = refs[1 + n_layers:1 + 2 * n_layers]
        o_ref = refs[1 + 2 * n_layers]

        h = z_ref[...]
        for li in range(n_layers):
            # cat([h, labels]) @ W.T + b  ==  h @ Wz.T + (labels @ Wy.T + b)
            acc = jnp.dot(h.astype(jnp.bfloat16), w_refs[li][...],
                          preferred_element_type=jnp.float32)
            h = acc + yb_refs[li][...]
            if li < n_layers - 1:
                h = _leaky_relu(h)
        o_ref[...] = jnp.tanh(h).astype(o_ref.dtype)

    return kernel


def make_decoder_params(key, latent_dim, n_classes, output_dim, hidden_dims):
    """PyTorch-style params: kaiming_normal_(fan_in, relu) weights, zero bias.

    Returns list of (W, b) with W shape (d_out, d_in + n_classes), b (d_out,).
    """
    dims_in = [latent_dim] + list(hidden_dims)
    dims_out = list(hidden_dims) + [output_dim]
    params = []
    for d_in, d_out in zip(dims_in, dims_out):
        fan_in = d_in + n_classes
        std = (2.0 / fan_in) ** 0.5
        key, kw = jax.random.split(key)
        w = jax.random.normal(kw, (d_out, fan_in), dtype=jnp.float32) * std
        b = jnp.zeros((d_out,), dtype=jnp.float32)
        params.append((w, b))
    return params


def decoder_forward(z, labels, params, *, batch_tile=128):
    """Run the Pallas decoder. z: (B, latent), labels: (B, n_classes)."""
    B, latent_dim = z.shape
    n_layers = len(params)
    B_pad = _round_up(B, batch_tile)

    # ---- prepare padded bf16 weights and per-sample (label) biases ----
    w_pads = []    # (d_in_pad, d_out_pad) bf16, z-part weights (transposed)
    yb_pads = []   # (B_pad, d_out_pad) f32, labels @ Wy.T + b (zero-padded)
    d_in = latent_dim
    for (W, b) in params:
        d_out = W.shape[0]
        wz = W[:, :d_in].T                     # (d_in, d_out)
        wy = W[:, d_in:].T                     # (n_classes, d_out)
        d_in_pad = _round_up(d_in, LANE)
        d_out_pad = _round_up(d_out, LANE)

        wz_p = jnp.zeros((d_in_pad, d_out_pad), jnp.float32)
        wz_p = wz_p.at[:d_in, :d_out].set(wz)
        w_pads.append(wz_p.astype(jnp.bfloat16))

        yb = labels @ wy + b[None, :]          # (B, d_out), label part + bias
        yb_p = jnp.zeros((B_pad, d_out_pad), jnp.float32)
        yb_p = yb_p.at[:B, :d_out].set(yb)
        yb_pads.append(yb_p)

        d_in = d_out

    out_dim = params[-1][0].shape[0]
    out_pad = _round_up(out_dim, LANE)
    lat_pad = _round_up(latent_dim, LANE)

    z_p = jnp.zeros((B_pad, lat_pad), jnp.float32).at[:B, :latent_dim].set(z)

    grid = (B_pad // batch_tile,)

    # Batch-tiled specs for activations, constant (resident) specs for weights.
    in_specs = [pl.BlockSpec((batch_tile, lat_pad), lambda i: (i, 0))]
    in_specs += [pl.BlockSpec((batch_tile, yb.shape[1]), lambda i: (i, 0))
                 for yb in yb_pads]
    in_specs += [pl.BlockSpec(w.shape, lambda i: (0, 0)) for w in w_pads]
    out_specs = pl.BlockSpec((batch_tile, out_pad), lambda i: (i, 0))

    # Advisory cost estimate so XLA can schedule around this small call.
    flops = 2 * B_pad * sum(w.shape[0] * w.shape[1] for w in w_pads)
    bytes_accessed = (z_p.size * 4
                      + sum(y.size * 4 for y in yb_pads)
                      + sum(w.size * 2 for w in w_pads)
                      + B_pad * out_pad * 4)
    cost = pl.CostEstimate(flops=flops,
                           transcendentals=B_pad * out_pad,   # tanh
                           bytes_accessed=bytes_accessed)

    out = pl.pallas_call(
        _make_decoder_kernel(n_layers),
        out_shape=jax.ShapeDtypeStruct((B_pad, out_pad), jnp.float32),
        grid=grid,
        in_specs=in_specs,
        out_specs=out_specs,
        compiler_params=pltpu.CompilerParams(
            dimension_semantics=("parallel",)),
        cost_estimate=cost,
    )(z_p, *yb_pads, *w_pads)

    return out[:B, :out_dim]


def decoder_reference(z, labels, params, latent_dim):
    """Pure-JAX reference mirroring the kernel numerics (bf16 MXU dots)."""
    h = z
    d_in = latent_dim
    n_layers = len(params)
    for idx, (W, b) in enumerate(params):
        wz = W[:, :d_in].T
        wy = W[:, d_in:].T
        hz = jnp.dot(h.astype(jnp.bfloat16), wz.astype(jnp.bfloat16),
                     preferred_element_type=jnp.float32)
        h = hz + labels @ wy + b[None, :]
        if idx < n_layers - 1:
            h = _leaky_relu(h)
        else:
            h = jnp.tanh(h)
        d_in = W.shape[0]
    return h


if __name__ == "__main__":
    # Small, shape-consistent config (batch big enough to exercise the grid).
    latent_dim, n_classes, output_dim = 16, 4, 64
    hidden_dims = [32, 64, 96]
    batch = 256

    key = jax.random.PRNGKey(0)
    kp, kz, ky = jax.random.split(key, 3)

    params = make_decoder_params(kp, latent_dim, n_classes, output_dim,
                                 hidden_dims)

    z = jax.random.normal(kz, (batch, latent_dim), dtype=jnp.float32)
    labels_idx = jax.random.randint(ky, (batch,), 0, n_classes)
    labels = jax.nn.one_hot(labels_idx, n_classes, dtype=jnp.float32)

    out = decoder_forward(z, labels, params, batch_tile=128)
    out = jax.block_until_ready(out)

    ref = decoder_reference(z, labels, params, latent_dim)
    assert out.shape == (batch, output_dim)
    assert jnp.allclose(out, ref, atol=2e-3, rtol=2e-3), "mismatch vs reference"

    print("KERNEL_OK")
</pallas_src>

<mosaic_0001>
module attributes {stable_mosaic.version = 11 : i64} {
  func.func @kernel(%arg0: i32, %arg1: memref<128x128xf32, #tpu.memory_space<vmem>>, %arg2: memref<128x128xf32, #tpu.memory_space<vmem>>, %arg3: memref<128x128xf32, #tpu.memory_space<vmem>>, %arg4: memref<128x128xf32, #tpu.memory_space<vmem>>, %arg5: memref<128x128xf32, #tpu.memory_space<vmem>>, %arg6: memref<128x128xbf16, #tpu.memory_space<vmem>>, %arg7: memref<128x128xbf16, #tpu.memory_space<vmem>>, %arg8: memref<128x128xbf16, #tpu.memory_space<vmem>>, %arg9: memref<128x128xbf16, #tpu.memory_space<vmem>>, %arg10: memref<128x128xf32, #tpu.memory_space<vmem>>) attributes {dimension_semantics = [#tpu.dimension_semantics<parallel>], iteration_bounds = array<i64: 2>, scalar_prefetch = 0 : i64, scratch_operands = 0 : i64, tpu.core_type = #tpu.core_type<tc>, window_params = [{transform_indices = @transform_0, window_bounds = array<i64: 128, 128>}, {transform_indices = @transform_1, window_bounds = array<i64: 128, 128>}, {transform_indices = @transform_2, window_bounds = array<i64: 128, 128>}, {transform_indices = @transform_3, window_bounds = array<i64: 128, 128>}, {transform_indices = @transform_4, window_bounds = array<i64: 128, 128>}, {pipeline_mode = #tpu.pipeline_mode<synchronous>, transform_indices = @transform_5, window_bounds = array<i64: 128, 128>}, {pipeline_mode = #tpu.pipeline_mode<synchronous>, transform_indices = @transform_6, window_bounds = array<i64: 128, 128>}, {pipeline_mode = #tpu.pipeline_mode<synchronous>, transform_indices = @transform_7, window_bounds = array<i64: 128, 128>}, {pipeline_mode = #tpu.pipeline_mode<synchronous>, transform_indices = @transform_8, window_bounds = array<i64: 128, 128>}, {transform_indices = @transform_9, window_bounds = array<i64: 128, 128>}]} {
    %c0 = arith.constant 0 : index
    %c0_0 = arith.constant 0 : index
    %0 = vector.load %arg1[%c0, %c0_0] : memref<128x128xf32, #tpu.memory_space<vmem>>, vector<128x128xf32>
    %1 = arith.truncf %0 : vector<128x128xf32> to vector<128x128xbf16>
    %c0_1 = arith.constant 0 : index
    %c0_2 = arith.constant 0 : index
    %2 = vector.load %arg6[%c0_1, %c0_2] : memref<128x128xbf16, #tpu.memory_space<vmem>>, vector<128x128xbf16>
    %cst = arith.constant dense<0.000000e+00> : vector<128x128xf32>
    %3 = tpu.matmul %1, %2, %cst {dimension_numbers = #tpu.dot_dimension_numbers<[1], [0], [0], [1], [0, 0, 1, 1], [], []>} : vector<128x128xbf16>, vector<128x128xbf16>, vector<128x128xf32> -> vector<128x128xf32>
    %c0_3 = arith.constant 0 : index
    %c0_4 = arith.constant 0 : index
    %4 = vector.load %arg2[%c0_3, %c0_4] : memref<128x128xf32, #tpu.memory_space<vmem>>, vector<128x128xf32>
    %5 = arith.addf %3, %4 : vector<128x128xf32>
    %cst_5 = arith.constant 0.000000e+00 : f32
    %6 = vector.broadcast %cst_5 : f32 to vector<128x128xf32>
    %7 = arith.cmpf ogt, %5, %6 : vector<128x128xf32>
    %cst_6 = arith.constant 2.000000e-01 : f32
    %8 = vector.broadcast %cst_6 : f32 to vector<128x128xf32>
    %9 = arith.mulf %8, %5 : vector<128x128xf32>
    %10 = arith.select %7, %5, %9 : vector<128x128xi1>, vector<128x128xf32>
    %11 = arith.truncf %10 : vector<128x128xf32> to vector<128x128xbf16>
    %c0_7 = arith.constant 0 : index
    %c0_8 = arith.constant 0 : index
    %12 = vector.load %arg7[%c0_7, %c0_8] : memref<128x128xbf16, #tpu.memory_space<vmem>>, vector<128x128xbf16>
    %cst_9 = arith.constant dense<0.000000e+00> : vector<128x128xf32>
    %13 = tpu.matmul %11, %12, %cst_9 {dimension_numbers = #tpu.dot_dimension_numbers<[1], [0], [0], [1], [0, 0, 1, 1], [], []>} : vector<128x128xbf16>, vector<128x128xbf16>, vector<128x128xf32> -> vector<128x128xf32>
    %c0_10 = arith.constant 0 : index
    %c0_11 = arith.constant 0 : index
    %14 = vector.load %arg3[%c0_10, %c0_11] : memref<128x128xf32, #tpu.memory_space<vmem>>, vector<128x128xf32>
    %15 = arith.addf %13, %14 : vector<128x128xf32>
    %cst_12 = arith.constant 0.000000e+00 : f32
    %16 = vector.broadcast %cst_12 : f32 to vector<128x128xf32>
    %17 = arith.cmpf ogt, %15, %16 : vector<128x128xf32>
    %cst_13 = arith.constant 2.000000e-01 : f32
    %18 = vector.broadcast %cst_13 : f32 to vector<128x128xf32>
    %19 = arith.mulf %18, %15 : vector<128x128xf32>
    %20 = arith.select %17, %15, %19 : vector<128x128xi1>, vector<128x128xf32>
    %21 = arith.truncf %20 : vector<128x128xf32> to vector<128x128xbf16>
    %c0_14 = arith.constant 0 : index
    %c0_15 = arith.constant 0 : index
    %22 = vector.load %arg8[%c0_14, %c0_15] : memref<128x128xbf16, #tpu.memory_space<vmem>>, vector<128x128xbf16>
    %cst_16 = arith.constant dense<0.000000e+00> : vector<128x128xf32>
    %23 = tpu.matmul %21, %22, %cst_16 {dimension_numbers = #tpu.dot_dimension_numbers<[1], [0], [0], [1], [0, 0, 1, 1], [], []>} : vector<128x128xbf16>, vector<128x128xbf16>, vector<128x128xf32> -> vector<128x128xf32>
    %c0_17 = arith.constant 0 : index
    %c0_18 = arith.constant 0 : index
    %24 = vector.load %arg4[%c0_17, %c0_18] : memref<128x128xf32, #tpu.memory_space<vmem>>, vector<128x128xf32>
    %25 = arith.addf %23, %24 : vector<128x128xf32>
    %cst_19 = arith.constant 0.000000e+00 : f32
    %26 = vector.broadcast %cst_19 : f32 to vector<128x128xf32>
    %27 = arith.cmpf ogt, %25, %26 : vector<128x128xf32>
    %cst_20 = arith.constant 2.000000e-01 : f32
    %28 = vector.broadcast %cst_20 : f32 to vector<128x128xf32>
    %29 = arith.mulf %28, %25 : vector<128x128xf32>
    %30 = arith.select %27, %25, %29 : vector<128x128xi1>, vector<128x128xf32>
    %31 = arith.truncf %30 : vector<128x128xf32> to vector<128x128xbf16>
    %c0_21 = arith.constant 0 : index
    %c0_22 = arith.constant 0 : index
    %32 = vector.load %arg9[%c0_21, %c0_22] : memref<128x128xbf16, #tpu.memory_space<vmem>>, vector<128x128xbf16>
    %cst_23 = arith.constant dense<0.000000e+00> : vector<128x128xf32>
    %33 = tpu.matmul %31, %32, %cst_23 {dimension_numbers = #tpu.dot_dimension_numbers<[1], [0], [0], [1], [0, 0, 1, 1], [], []>} : vector<128x128xbf16>, vector<128x128xbf16>, vector<128x128xf32> -> vector<128x128xf32>
    %c0_24 = arith.constant 0 : index
    %c0_25 = arith.constant 0 : index
    %34 = vector.load %arg5[%c0_24, %c0_25] : memref<128x128xf32, #tpu.memory_space<vmem>>, vector<128x128xf32>
    %35 = arith.addf %33, %34 : vector<128x128xf32>
    %36 = math.tanh %35 : vector<128x128xf32>
    %c0_26 = arith.constant 0 : index
    %c0_27 = arith.constant 0 : index
    %37 = vector.load %arg10[%c0_26, %c0_27] : memref<128x128xf32, #tpu.memory_space<vmem>>, vector<128x128xf32>
    tpu.vector_store %arg10[%c0_26, %c0_27], %36 {strides = array<i32>} : memref<128x128xf32, #tpu.memory_space<vmem>>, vector<128x128xf32>,
    return
  }
  func.func @transform_0(%arg0: i32) -> (i32, i32) {
    %c0_i32 = arith.constant 0 : i32
    %c0_i32_0 = arith.constant 0 : i32
    return %arg0, %c0_i32 : i32, i32
  }
  func.func @transform_1(%arg0: i32) -> (i32, i32) {
    %c0_i32 = arith.constant 0 : i32
    %c0_i32_0 = arith.constant 0 : i32
    return %arg0, %c0_i32 : i32, i32
  }
  func.func @transform_2(%arg0: i32) -> (i32, i32) {
    %c0_i32 = arith.constant 0 : i32
    %c0_i32_0 = arith.constant 0 : i32
    return %arg0, %c0_i32 : i32, i32
  }
  func.func @transform_3(%arg0: i32) -> (i32, i32) {
    %c0_i32 = arith.constant 0 : i32
    %c0_i32_0 = arith.constant 0 : i32
    return %arg0, %c0_i32 : i32, i32
  }
  func.func @transform_4(%arg0: i32) -> (i32, i32) {
    %c0_i32 = arith.constant 0 : i32
    %c0_i32_0 = arith.constant 0 : i32
    return %arg0, %c0_i32 : i32, i32
  }
  func.func @transform_5(%arg0: i32) -> (i32, i32) {
    %c0_i32 = arith.constant 0 : i32
    %c0_i32_0 = arith.constant 0 : i32
    %c0_i32_1 = arith.constant 0 : i32
    return %c0_i32, %c0_i32_0 : i32, i32
  }
  func.func @transform_6(%arg0: i32) -> (i32, i32) {
    %c0_i32 = arith.constant 0 : i32
    %c0_i32_0 = arith.constant 0 : i32
    %c0_i32_1 = arith.constant 0 : i32
    return %c0_i32, %c0_i32_0 : i32, i32
  }
  func.func @transform_7(%arg0: i32) -> (i32, i32) {
    %c0_i32 = arith.constant 0 : i32
    %c0_i32_0 = arith.constant 0 : i32
    %c0_i32_1 = arith.constant 0 : i32
    return %c0_i32, %c0_i32_0 : i32, i32
  }
  func.func @transform_8(%arg0: i32) -> (i32, i32) {
    %c0_i32 = arith.constant 0 : i32
    %c0_i32_0 = arith.constant 0 : i32
    %c0_i32_1 = arith.constant 0 : i32
    return %c0_i32, %c0_i32_0 : i32, i32
  }
  func.func @transform_9(%arg0: i32) -> (i32, i32) {
    %c0_i32 = arith.constant 0 : i32
    %c0_i32_0 = arith.constant 0 : i32
    return %arg0, %c0_i32 : i32, i32
  }
}

</mosaic_0001>

<llo_original>
// kernel: tpu_custom_call.1
$region0: #{tpu_custom_call.1}
  #allocation0 [shape = 'u32[]', space=smem, size = 0x4, offset = 0x4, fixed_abs, tag = 'smem constant byte address 0x4 - core index']
  #allocation1 [shape = 'u32[144,128]{1,0:T(1,128)}', space=vmem, size = 0x12000, scoped, tag = 'internal scratch']
  %s0 = inlined_call_operand.hbm [shape: f32[256,128], index: 0, kind: input, shape index: {}]
  %s1 = inlined_call_operand.hbm [shape: f32[256,128], index: 1, kind: input, shape index: {}]
  %s2 = inlined_call_operand.hbm [shape: f32[256,128], index: 2, kind: input, shape index: {}]
  %s3 = inlined_call_operand.hbm [shape: f32[256,128], index: 3, kind: input, shape index: {}]
  %s4 = inlined_call_operand.hbm [shape: f32[256,128], index: 4, kind: input, shape index: {}]
  %s5 = inlined_call_operand.hbm [shape: bf16[128,128], index: 5, kind: input, shape index: {}]
  %s6 = inlined_call_operand.hbm [shape: bf16[128,128], index: 6, kind: input, shape index: {}]
  %s7 = inlined_call_operand.hbm [shape: bf16[128,128], index: 7, kind: input, shape index: {}]
  %s8 = inlined_call_operand.hbm [shape: bf16[128,128], index: 8, kind: input, shape index: {}]
  %s9 = inlined_call_operand.hbm [shape: f32[256,128], index: 9, kind: output, shape index: {}]
  %s10 = sld [smem:[#allocation0]]
  $region105: #{tpu_custom_call.1} parent=0
    _
  %s12 = ssub.s32 1, %s10
  %s13 = scalar_select 0, %s12, %s10
  $region1: #{tpu_custom_call.1} parent=0
    #allocation2 [shape = 'u8[131072]{0}', space=vmem, size = 0x20000, scoped, tag = 'input window, operand 0']
    #allocation3 [shape = 's32[2]{0}', space=sflag, size = 0x8, scoped, tag = 'scoped memory for tpu_custom_call.1']
    #allocation4 [shape = 's32[2]{0}', space=sflag, size = 0x8, scoped, tag = 'scoped memory for tpu_custom_call.1']
    #allocation5 [shape = 'u8[131072]{0}', space=vmem, size = 0x20000, scoped, tag = 'input window, operand 1']
    #allocation6 [shape = 's32[2]{0}', space=sflag, size = 0x8, scoped, tag = 'scoped memory for tpu_custom_call.1']
    #allocation7 [shape = 'u8[131072]{0}', space=vmem, size = 0x20000, scoped, tag = 'input window, operand 2']
    #allocation8 [shape = 'u8[131072]{0}', space=vmem, size = 0x20000, scoped, tag = 'input window, operand 3']
    #allocation9 [shape = 's32[2]{0}', space=sflag, size = 0x8, scoped, tag = 'scoped memory for tpu_custom_call.1']
    #allocation10 [shape = 'u8[131072]{0}', space=vmem, size = 0x20000, scoped, tag = 'input window, operand 4']
    #allocation11 [shape = 'u8[32768]{0}', space=vmem, size = 0x8000, scoped, tag = 'input window, operand 5, single buffered']
    #allocation12 [shape = 's32[1]{0}', space=sflag, size = 0x4, scoped, tag = 'scoped memory for tpu_custom_call.1']
    #allocation13 [shape = 'u8[32768]{0}', space=vmem, size = 0x8000, scoped, tag = 'input window, operand 6, single buffered']
    #allocation14 [shape = 'u8[32768]{0}', space=vmem, size = 0x8000, scoped, tag = 'input window, operand 7, single buffered']
    #allocation15 [shape = 's32[1]{0}', space=sflag, size = 0x4, scoped, tag = 'scoped memory for tpu_custom_call.1']
    #allocation16 [shape = 'u8[32768]{0}', space=vmem, size = 0x8000, scoped, tag = 'input window, operand 8, single buffered']
    #allocation17 [shape = 'u8[131072]{0}', space=vmem, size = 0x20000, scoped, tag = 'output window, operand 0']
    %14 = vsyncpa [#allocation3], 0
    %s15 = scalar_lea.sflag [#allocation3], 1
    %16 = vsyncpa %s15, 0
    %17 = vsyncpa [#allocation6], 0
    %s18 = scalar_lea.sflag [#allocation6], 1
    %19 = vsyncpa %s18, 0
    %20 = vsyncpa [#allocation9], 0
    %s21 = scalar_lea.sflag [#allocation9], 1
    %22 = vsyncpa %s21, 0
    %23 = vsyncpa [#allocation12], 0
    %24 = vsyncpa [#allocation15], 0
    %25 = vsyncpa [#allocation4], 0
    %s26 = scalar_lea.sflag [#allocation4], 1
    %27 = vsyncpa %s26, 0
    loop: start=0, step=1, limit=4
    $region2: #{tpu_custom_call.1} parent=1 // loop_pre_header
      _
    $region3: #{tpu_custom_call.1} parent=1 // loop_header
      %s29 = sphi 0, %s33
      %p30 = scmp.ge.s32.totalorder %s29, 4
      %s39 = sphi 0, %s41
      %s42 = sphi 0, %s39
      %s43 = sphi 0, %s42
      %s59 = sphi 0, %s43
      %s65 = sphi 0, %s67
      %s68 = sphi 0, %s65
      %s69 = sphi 0, %s68
      %s85 = sphi 0, %s69
      %s91 = sphi 0, %s93
      %s94 = sphi 0, %s91
      %s95 = sphi 0, %s94
      %s111 = sphi 0, %s95
      %s117 = sphi 0, %s119
      %s120 = sphi 0, %s117
      %s121 = sphi 0, %s120
      %s137 = sphi 0, %s121
      %s143 = sphi 0, %s145
      %s146 = sphi 0, %s143
      %s147 = sphi 0, %s146
      %s163 = sphi 0, %s147
      %s167 = sphi 0, %s167
      %s169 = sphi 0, %s167
      %s170 = sphi 0, %s169
      %s184 = sphi 0, %s170
      %s188 = sphi 0, %s188
      %s190 = sphi 0, %s188
      %s191 = sphi 0, %s190
      %s205 = sphi 0, %s191
      %s209 = sphi 0, %s209
      %s211 = sphi 0, %s209
      %s212 = sphi 0, %s211
      %s226 = sphi 0, %s212
      %s230 = sphi 0, %s230
      %s232 = sphi 0, %s230
      %s233 = sphi 0, %s232
      %s247 = sphi 0, %s233
      %s253 = sphi 0, %s255
      %s256 = sphi 0, %s253
      %s257 = sphi 0, %s256
      %s273 = sphi 0, %s257
    $region4: #{tpu_custom_call.1} parent=1 // loop_header_branch
      %32 = sbr.rel (%p30) target = $region8
    $region5: #{tpu_custom_call.1} parent=1 // loop_body
      %s34 = ssub.s32 %s29, 1
      %s35 = ssub.s32 %s29, 2
      %s36 = sadd.s32 %s29, 1
      %s37 = ssub.s32 %s29, %s36
      %p38 = scmp.eq.s32.totalorder %s37, 0
      %s40 = sadd.s32 %s39, 1
      %s41 = scalar_select %p38, %s39, %s40
      %p44 = pneg %p38
      %p45 = scmp.eq.s32.totalorder %s29, 1
      %p46 = por %p44, %p45
      %p47 = scmp.ne.s32.totalorder %s39, %s42
      %p48 = scmp.eq.s32.totalorder %s29, 0
      %p49 = por %p47, %p48
      %p50 = scmp.ne.s32.totalorder %s39, %s42
      %p51 = scmp.eq.s32.totalorder %s34, 1
      %p52 = por %p50, %p51
      %p53 = scmp.ne.s32.totalorder %s42, %s43
      %p54 = scmp.eq.s32.totalorder %s34, 0
      %p55 = por %p53, %p54
      %p56 = scmp.ne.s32.totalorder %s42, %s43
      %p57 = scmp.eq.s32.totalorder %s35, 1
      %p58 = por %p56, %p57
      %p60 = scmp.ne.s32.totalorder %s43, %s59
      %p61 = scmp.eq.s32.totalorder %s35, 0
      %p62 = por %p60, %p61
      %s63 = ssub.s32 %s29, %s36
      %p64 = scmp.eq.s32.totalorder %s63, 0
      %s66 = sadd.s32 %s65, 1
      %s67 = scalar_select %p64, %s65, %s66
      %p70 = pneg %p64
      %p71 = scmp.eq.s32.totalorder %s29, 1
      %p72 = por %p70, %p71
      %p73 = scmp.ne.s32.totalorder %s65, %s68
      %p74 = scmp.eq.s32.totalorder %s29, 0
      %p75 = por %p73, %p74
      %p76 = scmp.ne.s32.totalorder %s65, %s68
      %p77 = scmp.eq.s32.totalorder %s34, 1
      %p78 = por %p76, %p77
      %p79 = scmp.ne.s32.totalorder %s68, %s69
      %p80 = scmp.eq.s32.totalorder %s34, 0
      %p81 = por %p79, %p80
      %p82 = scmp.ne.s32.totalorder %s68, %s69
      %p83 = scmp.eq.s32.totalorder %s35, 1
      %p84 = por %p82, %p83
      %p86 = scmp.ne.s32.totalorder %s69, %s85
      %p87 = scmp.eq.s32.totalorder %s35, 0
      %p88 = por %p86, %p87
      %s89 = ssub.s32 %s29, %s36
      %p90 = scmp.eq.s32.totalorder %s89, 0
      %s92 = sadd.s32 %s91, 1
      %s93 = scalar_select %p90, %s91, %s92
      %p96 = pneg %p90
      %p97 = scmp.eq.s32.totalorder %s29, 1
      %p98 = por %p96, %p97
      %p99 = scmp.ne.s32.totalorder %s91, %s94
      %p100 = scmp.eq.s32.totalorder %s29, 0
      %p101 = por %p99, %p100
      %p102 = scmp.ne.s32.totalorder %s91, %s94
      %p103 = scmp.eq.s32.totalorder %s34, 1
      %p104 = por %p102, %p103
      %p105 = scmp.ne.s32.totalorder %s94, %s95
      %p106 = scmp.eq.s32.totalorder %s34, 0
      %p107 = por %p105, %p106
      %p108 = scmp.ne.s32.totalorder %s94, %s95
      %p109 = scmp.eq.s32.totalorder %s35, 1
      %p110 = por %p108, %p109
      %p112 = scmp.ne.s32.totalorder %s95, %s111
      %p113 = scmp.eq.s32.totalorder %s35, 0
      %p114 = por %p112, %p113
      %s115 = ssub.s32 %s29, %s36
      %p116 = scmp.eq.s32.totalorder %s115, 0
      %s118 = sadd.s32 %s117, 1
      %s119 = scalar_select %p116, %s117, %s118
      %p122 = pneg %p116
      %p123 = scmp.eq.s32.totalorder %s29, 1
      %p124 = por %p122, %p123
      %p125 = scmp.ne.s32.totalorder %s117, %s120
      %p126 = scmp.eq.s32.totalorder %s29, 0
      %p127 = por %p125, %p126
      %p128 = scmp.ne.s32.totalorder %s117, %s120
      %p129 = scmp.eq.s32.totalorder %s34, 1
      %p130 = por %p128, %p129
      %p131 = scmp.ne.s32.totalorder %s120, %s121
      %p132 = scmp.eq.s32.totalorder %s34, 0
      %p133 = por %p131, %p132
      %p134 = scmp.ne.s32.totalorder %s120, %s121
      %p135 = scmp.eq.s32.totalorder %s35, 1
      %p136 = por %p134, %p135
      %p138 = scmp.ne.s32.totalorder %s121, %s137
      %p139 = scmp.eq.s32.totalorder %s35, 0
      %p140 = por %p138, %p139
      %s141 = ssub.s32 %s29, %s36
      %p142 = scmp.eq.s32.totalorder %s141, 0
      %s144 = sadd.s32 %s143, 1
      %s145 = scalar_select %p142, %s143, %s144
      %p148 = pneg %p142
      %p149 = scmp.eq.s32.totalorder %s29, 1
      %p150 = por %p148, %p149
      %p151 = scmp.ne.s32.totalorder %s143, %s146
      %p152 = scmp.eq.s32.totalorder %s29, 0
      %p153 = por %p151, %p152
      %p154 = scmp.ne.s32.totalorder %s143, %s146
      %p155 = scmp.eq.s32.totalorder %s34, 1
      %p156 = por %p154, %p155
      %p157 = scmp.ne.s32.totalorder %s146, %s147
      %p158 = scmp.eq.s32.totalorder %s34, 0
      %p159 = por %p157, %p158
      %p160 = scmp.ne.s32.totalorder %s146, %s147
      %p161 = scmp.eq.s32.totalorder %s35, 1
      %p162 = por %p160, %p161
      %p164 = scmp.ne.s32.totalorder %s147, %s163
      %p165 = scmp.eq.s32.totalorder %s35, 0
      %p166 = por %p164, %p165
      %s168 = sadd.s32 %s167, 1
      %p171 = scmp.eq.s32.totalorder %s29, 1
      %p172 = scmp.ne.s32.totalorder %s167, %s169
      %p173 = scmp.eq.s32.totalorder %s29, 0
      %p174 = por %p172, %p173
      %p175 = scmp.ne.s32.totalorder %s167, %s169
      %p176 = scmp.eq.s32.totalorder %s34, 1
      %p177 = por %p175, %p176
      %p178 = scmp.ne.s32.totalorder %s169, %s170
      %p179 = scmp.eq.s32.totalorder %s34, 0
      %p180 = por %p178, %p179
      %p181 = scmp.ne.s32.totalorder %s169, %s170
      %p182 = scmp.eq.s32.totalorder %s35, 1
      %p183 = por %p181, %p182
      %p185 = scmp.ne.s32.totalorder %s170, %s184
      %p186 = scmp.eq.s32.totalorder %s35, 0
      %p187 = por %p185, %p186
      %s189 = sadd.s32 %s188, 1
      %p192 = scmp.eq.s32.totalorder %s29, 1
      %p193 = scmp.ne.s32.totalorder %s188, %s190
      %p194 = scmp.eq.s32.totalorder %s29, 0
      %p195 = por %p193, %p194
      %p196 = scmp.ne.s32.totalorder %s188, %s190
      %p197 = scmp.eq.s32.totalorder %s34, 1
      %p198 = por %p196, %p197
      %p199 = scmp.ne.s32.totalorder %s190, %s191
      %p200 = scmp.eq.s32.totalorder %s34, 0
      %p201 = por %p199, %p200
      %p202 = scmp.ne.s32.totalorder %s190, %s191
      %p203 = scmp.eq.s32.totalorder %s35, 1
      %p204 = por %p202, %p203
      %p206 = scmp.ne.s32.totalorder %s191, %s205
      %p207 = scmp.eq.s32.totalorder %s35, 0
      %p208 = por %p206, %p207
      %s210 = sadd.s32 %s209, 1
      %p213 = scmp.eq.s32.totalorder %s29, 1
      %p214 = scmp.ne.s32.totalorder %s209, %s211
      %p215 = scmp.eq.s32.totalorder %s29, 0
      %p216 = por %p214, %p215
      %p217 = scmp.ne.s32.totalorder %s209, %s211
      %p218 = scmp.eq.s32.totalorder %s34, 1
      %p219 = por %p217, %p218
      %p220 = scmp.ne.s32.totalorder %s211, %s212
      %p221 = scmp.eq.s32.totalorder %s34, 0
      %p222 = por %p220, %p221
      %p223 = scmp.ne.s32.totalorder %s211, %s212
      %p224 = scmp.eq.s32.totalorder %s35, 1
      %p225 = por %p223, %p224
      %p227 = scmp.ne.s32.totalorder %s212, %s226
      %p228 = scmp.eq.s32.totalorder %s35, 0
      %p229 = por %p227, %p228
      %s231 = sadd.s32 %s230, 1
      %p234 = scmp.eq.s32.totalorder %s29, 1
      %p235 = scmp.ne.s32.totalorder %s230, %s232
      %p236 = scmp.eq.s32.totalorder %s29, 0
      %p237 = por %p235, %p236
      %p238 = scmp.ne.s32.totalorder %s230, %s232
      %p239 = scmp.eq.s32.totalorder %s34, 1
      %p240 = por %p238, %p239
      %p241 = scmp.ne.s32.totalorder %s232, %s233
      %p242 = scmp.eq.s32.totalorder %s34, 0
      %p243 = por %p241, %p242
      %p244 = scmp.ne.s32.totalorder %s232, %s233
      %p245 = scmp.eq.s32.totalorder %s35, 1
      %p246 = por %p244, %p245
      %p248 = scmp.ne.s32.totalorder %s233, %s247
      %p249 = scmp.eq.s32.totalorder %s35, 0
      %p250 = por %p248, %p249
      %s251 = ssub.s32 %s29, %s36
      %p252 = scmp.eq.s32.totalorder %s251, 0
      %s254 = sadd.s32 %s253, 1
      %s255 = scalar_select %p252, %s253, %s254
      %p258 = pneg %p252
      %p259 = scmp.eq.s32.totalorder %s29, 1
      %p260 = por %p258, %p259
      %p261 = scmp.ne.s32.totalorder %s253, %s256
      %p262 = scmp.eq.s32.totalorder %s29, 0
      %p263 = por %p261, %p262
      %p264 = scmp.ne.s32.totalorder %s253, %s256
      %p265 = scmp.eq.s32.totalorder %s34, 1
      %p266 = por %p264, %p265
      %p267 = scmp.ne.s32.totalorder %s256, %s257
      %p268 = scmp.eq.s32.totalorder %s34, 0
      %p269 = por %p267, %p268
      %p270 = scmp.ne.s32.totalorder %s256, %s257
      %p271 = scmp.eq.s32.totalorder %s35, 1
      %p272 = por %p270, %p271
      %p274 = scmp.ne.s32.totalorder %s257, %s273
      %p275 = scmp.eq.s32.totalorder %s35, 0
      %p276 = por %p274, %p275
      %p277 = scmp.le.s32.totalorder 1, %s29
      %p278 = scmp.lt.s32.totalorder %s29, 3
      %p279 = pnand %p277, %p278
      %p280 = pneg %p279
      // Predicated region
      $region9: #{tpu_custom_call.1} parent=5 // pred_check
        _
      $region10: #{tpu_custom_call.1} parent=5 // pred_check_branch
        %282 = sbr.rel (%p279) target = $region12
      $region11: #{tpu_custom_call.1} parent=5 // pred_region
        %s283 = ssub.s32 %s29, 1
        // Predicated region
        $region13: #{tpu_custom_call.1} parent=11 // pred_check
          %p284 = pneg %p180
        $region14: #{tpu_custom_call.1} parent=11 // pred_check_branch
          %286 = sbr.rel (%p284) target = $region16
        $region15: #{tpu_custom_call.1} parent=11 // pred_region
          %s288 = ssub.s32 1024, 1024
          %289 = vsyncadd [#allocation12], %s288
          %s290 = sshll.u32 [#allocation11], 4
          %s291 = int_to_ptr.vmem [resolvable:$true] %s290
          %296 = dma.hbm_to_vmem [thread:$0]  %s5, 1024, %s291, [#allocation12], 64, 64, 4
        $region16: #{tpu_custom_call.1} parent=11 // pred_fallthru
          _
        // Predicated region
        $region17: #{tpu_custom_call.1} parent=11 // pred_check
          %p297 = pneg %p201
        $region18: #{tpu_custom_call.1} parent=11 // pred_check_branch
          %299 = sbr.rel (%p297) target = $region20
        $region19: #{tpu_custom_call.1} parent=11 // pred_region
          %s301 = ssub.s32 1024, 1024
          %302 = vsyncadd [#allocation12], %s301
          %s303 = sshll.u32 [#allocation13], 4
          %s304 = int_to_ptr.vmem [resolvable:$true] %s303
          %309 = dma.hbm_to_vmem [thread:$0]  %s6, 1024, %s304, [#allocation12], 64, 64, 4
        $region20: #{tpu_custom_call.1} parent=11 // pred_fallthru
          _
        // Predicated region
        $region21: #{tpu_custom_call.1} parent=11 // pred_check
          %p310 = pneg %p222
        $region22: #{tpu_custom_call.1} parent=11 // pred_check_branch
          %312 = sbr.rel (%p310) target = $region24
        $region23: #{tpu_custom_call.1} parent=11 // pred_region
          %s314 = ssub.s32 1024, 1024
          %315 = vsyncadd [#allocation15], %s314
          %s316 = sshll.u32 [#allocation14], 4
          %s317 = int_to_ptr.vmem [resolvable:$true] %s316
          %322 = dma.hbm_to_vmem [thread:$0]  %s7, 1024, %s317, [#allocation15], 64, 64, 4
        $region24: #{tpu_custom_call.1} parent=11 // pred_fallthru
          _
        // Predicated region
        $region25: #{tpu_custom_call.1} parent=11 // pred_check
          %p323 = pneg %p243
        $region26: #{tpu_custom_call.1} parent=11 // pred_check_branch
          %325 = sbr.rel (%p323) target = $region28
        $region27: #{tpu_custom_call.1} parent=11 // pred_region
          %s327 = ssub.s32 1024, 1024
          %328 = vsyncadd [#allocation15], %s327
          %s329 = sshll.u32 [#allocation16], 4
          %s330 = int_to_ptr.vmem [resolvable:$true] %s329
          %335 = dma.hbm_to_vmem [thread:$0]  %s8, 1024, %s330, [#allocation15], 64, 64, 4
        $region28: #{tpu_custom_call.1} parent=11 // pred_fallthru
          _
      $region12: #{tpu_custom_call.1} parent=5 // pred_fallthru
        _
      %p336 = scmp.lt.s32.totalorder %s29, 2
      // Predicated region
      $region29: #{tpu_custom_call.1} parent=5 // pred_check
        %p337 = pneg %p336
      $region30: #{tpu_custom_call.1} parent=5 // pred_check_branch
        %339 = sbr.rel (%p337) target = $region32
      $region31: #{tpu_custom_call.1} parent=5 // pred_region
        // Predicated region
        $region33: #{tpu_custom_call.1} parent=31 // pred_check
          %p340 = pneg %p49
        $region34: #{tpu_custom_call.1} parent=31 // pred_check_branch
          %342 = sbr.rel (%p340) target = $region36
        $region35: #{tpu_custom_call.1} parent=31 // pred_region
          %s343 = sand.u32 %s39, 1
          %s344 = scalar_lea.sflag [#allocation3], %s343
          %s345 = sand.u32 %s39, 1
          %s346 = smul.addr %s345, 128
          %s347 = scalar_lea.vmem [#allocation2], %s346
          %s348 = smul.u32 16, %s29
          %s350 = ssub.s32 2048, 2048
          %351 = vsyncadd %s344, %s350
          %s352 = smul.addr %s348, 128
          %s353 = scalar_lea.hbm %s0, %s352
          %s354 = sshll.u32 %s347, 4
          %s355 = int_to_ptr.vmem [resolvable:$true] %s354
          %360 = dma.hbm_to_vmem [thread:$0]  %s353, 2048, %s355, %s344, 128, 128, 8
        $region36: #{tpu_custom_call.1} parent=31 // pred_fallthru
          _
        // Predicated region
        $region37: #{tpu_custom_call.1} parent=31 // pred_check
          %p361 = pneg %p75
        $region38: #{tpu_custom_call.1} parent=31 // pred_check_branch
          %363 = sbr.rel (%p361) target = $region40
        $region39: #{tpu_custom_call.1} parent=31 // pred_region
          %s364 = sand.u32 %s29, 1
          %s365 = scalar_lea.sflag [#allocation6], %s364
          %s366 = sand.u32 %s65, 1
          %s367 = smul.addr %s366, 128
          %s368 = scalar_lea.vmem [#allocation5], %s367
          %s369 = smul.u32 16, %s29
          %s371 = ssub.s32 2048, 2048
          %372 = vsyncadd %s365, %s371
          %s373 = smul.addr %s369, 128
          %s374 = scalar_lea.hbm %s1, %s373
          %s375 = sshll.u32 %s368, 4
          %s376 = int_to_ptr.vmem [resolvable:$true] %s375
          %381 = dma.hbm_to_vmem [thread:$0]  %s374, 2048, %s376, %s365, 128, 128, 8
        $region40: #{tpu_custom_call.1} parent=31 // pred_fallthru
          _
        // Predicated region
        $region41: #{tpu_custom_call.1} parent=31 // pred_check
          %p382 = pneg %p101
        $region42: #{tpu_custom_call.1} parent=31 // pred_check_branch
          %384 = sbr.rel (%p382) target = $region44
        $region43: #{tpu_custom_call.1} parent=31 // pred_region
          %s385 = sand.u32 %s29, 1
          %s386 = scalar_lea.sflag [#allocation6], %s385
          %s387 = sand.u32 %s91, 1
          %s388 = smul.addr %s387, 128
          %s389 = scalar_lea.vmem [#allocation7], %s388
          %s390 = smul.u32 16, %s29
          %s392 = ssub.s32 2048, 2048
          %393 = vsyncadd %s386, %s392
          %s394 = smul.addr %s390, 128
          %s395 = scalar_lea.hbm %s2, %s394
          %s396 = sshll.u32 %s389, 4
          %s397 = int_to_ptr.vmem [resolvable:$true] %s396
          %402 = dma.hbm_to_vmem [thread:$0]  %s395, 2048, %s397, %s386, 128, 128, 8
        $region44: #{tpu_custom_call.1} parent=31 // pred_fallthru
          _
        // Predicated region
        $region45: #{tpu_custom_call.1} parent=31 // pred_check
          %p403 = pneg %p127
        $region46: #{tpu_custom_call.1} parent=31 // pred_check_branch
          %405 = sbr.rel (%p403) target = $region48
        $region47: #{tpu_custom_call.1} parent=31 // pred_region
          %s406 = sand.u32 %s29, 1
          %s407 = scalar_lea.sflag [#allocation9], %s406
          %s408 = sand.u32 %s117, 1
          %s409 = smul.addr %s408, 128
          %s410 = scalar_lea.vmem [#allocation8], %s409
          %s411 = smul.u32 16, %s29
          %s413 = ssub.s32 2048, 2048
          %414 = vsyncadd %s407, %s413
          %s415 = smul.addr %s411, 128
          %s416 = scalar_lea.hbm %s3, %s415
          %s417 = sshll.u32 %s410, 4
          %s418 = int_to_ptr.vmem [resolvable:$true] %s417
          %423 = dma.hbm_to_vmem [thread:$0]  %s416, 2048, %s418, %s407, 128, 128, 8
        $region48: #{tpu_custom_call.1} parent=31 // pred_fallthru
          _
        // Predicated region
        $region49: #{tpu_custom_call.1} parent=31 // pred_check
          %p424 = pneg %p153
        $region50: #{tpu_custom_call.1} parent=31 // pred_check_branch
          %426 = sbr.rel (%p424) target = $region52
        $region51: #{tpu_custom_call.1} parent=31 // pred_region
          %s427 = sand.u32 %s29, 1
          %s428 = scalar_lea.sflag [#allocation9], %s427
          %s429 = sand.u32 %s143, 1
          %s430 = smul.addr %s429, 128
          %s431 = scalar_lea.vmem [#allocation10], %s430
          %s432 = smul.u32 16, %s29
          %s434 = ssub.s32 2048, 2048
          %435 = vsyncadd %s428, %s434
          %s436 = smul.addr %s432, 128
          %s437 = scalar_lea.hbm %s4, %s436
          %s438 = sshll.u32 %s431, 4
          %s439 = int_to_ptr.vmem [resolvable:$true] %s438
          %444 = dma.hbm_to_vmem [thread:$0]  %s437, 2048, %s439, %s428, 128, 128, 8
        $region52: #{tpu_custom_call.1} parent=31 // pred_fallthru
          _
      $region32: #{tpu_custom_call.1} parent=5 // pred_fallthru
        _
      %p445 = scmp.le.s32.totalorder 1, %s29
      %p446 = scmp.lt.s32.totalorder %s29, 3
      %p447 = pnand %p445, %p446
      %p448 = pneg %p447
      // Predicated region
      $region53: #{tpu_custom_call.1} parent=5 // pred_check
        _
      $region54: #{tpu_custom_call.1} parent=5 // pred_check_branch
        %450 = sbr.rel (%p447) target = $region56
      $region55: #{tpu_custom_call.1} parent=5 // pred_region
        %s451 = ssub.s32 %s29, 1
        %s452 = sand.u32 %s42, 1
        %s453 = scalar_lea.sflag [#allocation3], %s452
        %s454 = sand.u32 %s42, 1
        %s455 = smul.addr %s454, 128
        %s456 = scalar_lea.vmem [#allocation2], %s455
        // Predicated region
        $region57: #{tpu_custom_call.1} parent=55 // pred_check
          %p457 = pneg %p55
        $region58: #{tpu_custom_call.1} parent=55 // pred_check_branch
          %459 = sbr.rel (%p457) target = $region60
        $region59: #{tpu_custom_call.1} parent=55 // pred_region
          %460 = dma.done %s453, 2048
        $region60: #{tpu_custom_call.1} parent=55 // pred_fallthru
          _
        %s461 = sand.u32 %s34, 1
        %s462 = scalar_lea.sflag [#allocation6], %s461
        %s463 = sand.u32 %s68, 1
        %s464 = smul.addr %s463, 128
        %s465 = scalar_lea.vmem [#allocation5], %s464
        // Predicated region
        $region61: #{tpu_custom_call.1} parent=55 // pred_check
          %p466 = pneg %p81
        $region62: #{tpu_custom_call.1} parent=55 // pred_check_branch
          %468 = sbr.rel (%p466) target = $region64
        $region63: #{tpu_custom_call.1} parent=55 // pred_region
          %469 = dma.done %s462, 2048
        $region64: #{tpu_custom_call.1} parent=55 // pred_fallthru
          _
        %s470 = sand.u32 %s34, 1
        %s471 = scalar_lea.sflag [#allocation6], %s470
        %s472 = sand.u32 %s94, 1
        %s473 = smul.addr %s472, 128
        %s474 = scalar_lea.vmem [#allocation7], %s473
        // Predicated region
        $region65: #{tpu_custom_call.1} parent=55 // pred_check
          %p475 = pneg %p107
        $region66: #{tpu_custom_call.1} parent=55 // pred_check_branch
          %477 = sbr.rel (%p475) target = $region68
        $region67: #{tpu_custom_call.1} parent=55 // pred_region
          %478 = dma.done %s471, 2048
        $region68: #{tpu_custom_call.1} parent=55 // pred_fallthru
          _
        %s479 = sand.u32 %s34, 1
        %s480 = scalar_lea.sflag [#allocation9], %s479
        %s481 = sand.u32 %s120, 1
        %s482 = smul.addr %s481, 128
        %s483 = scalar_lea.vmem [#allocation8], %s482
        // Predicated region
        $region69: #{tpu_custom_call.1} parent=55 // pred_check
          %p484 = pneg %p133
        $region70: #{tpu_custom_call.1} parent=55 // pred_check_branch
          %486 = sbr.rel (%p484) target = $region72
        $region71: #{tpu_custom_call.1} parent=55 // pred_region
          %487 = dma.done %s480, 2048
        $region72: #{tpu_custom_call.1} parent=55 // pred_fallthru
          _
        %s488 = sand.u32 %s34, 1
        %s489 = scalar_lea.sflag [#allocation9], %s488
        %s490 = sand.u32 %s146, 1
        %s491 = smul.addr %s490, 128
        %s492 = scalar_lea.vmem [#allocation10], %s491
        // Predicated region
        $region73: #{tpu_custom_call.1} parent=55 // pred_check
          %p493 = pneg %p159
        $region74: #{tpu_custom_call.1} parent=55 // pred_check_branch
          %495 = sbr.rel (%p493) target = $region76
        $region75: #{tpu_custom_call.1} parent=55 // pred_region
          %496 = dma.done %s489, 2048
        $region76: #{tpu_custom_call.1} parent=55 // pred_fallthru
          _
        // Predicated region
        $region77: #{tpu_custom_call.1} parent=55 // pred_check
          %p497 = pneg %p180
        $region78: #{tpu_custom_call.1} parent=55 // pred_check_branch
          %499 = sbr.rel (%p497) target = $region80
        $region79: #{tpu_custom_call.1} parent=55 // pred_region
          %500 = dma.done [#allocation12], 1024
        $region80: #{tpu_custom_call.1} parent=55 // pred_fallthru
          _
        // Predicated region
        $region81: #{tpu_custom_call.1} parent=55 // pred_check
          %p501 = pneg %p201
        $region82: #{tpu_custom_call.1} parent=55 // pred_check_branch
          %503 = sbr.rel (%p501) target = $region84
        $region83: #{tpu_custom_call.1} parent=55 // pred_region
          %504 = dma.done [#allocation12], 1024
        $region84: #{tpu_custom_call.1} parent=55 // pred_fallthru
          _
        // Predicated region
        $region85: #{tpu_custom_call.1} parent=55 // pred_check
          %p505 = pneg %p222
        $region86: #{tpu_custom_call.1} parent=55 // pred_check_branch
          %507 = sbr.rel (%p505) target = $region88
        $region87: #{tpu_custom_call.1} parent=55 // pred_region
          %508 = dma.done [#allocation15], 1024
        $region88: #{tpu_custom_call.1} parent=55 // pred_fallthru
          _
        // Predicated region
        $region89: #{tpu_custom_call.1} parent=55 // pred_check
          %p509 = pneg %p243
        $region90: #{tpu_custom_call.1} parent=55 // pred_check_branch
          %511 = sbr.rel (%p509) target = $region92
        $region91: #{tpu_custom_call.1} parent=55 // pred_region
          %512 = dma.done [#allocation15], 1024
        $region92: #{tpu_custom_call.1} parent=55 // pred_fallthru
          _
        %s513 = sand.u32 %s42, 1
        %s514 = scalar_lea.sflag [#allocation3], %s513
        %s515 = sand.u32 %s42, 1
        %s516 = smul.addr %s515, 128
        %s517 = scalar_lea.vmem [#allocation2], %s516
        %p518 = pneg %p55
        %p519 = pneg %p52
        %s520 = sand.u32 %s34, 1
        %s521 = scalar_lea.sflag [#allocation6], %s520
        %s522 = sand.u32 %s68, 1
        %s523 = smul.addr %s522, 128
        %s524 = scalar_lea.vmem [#allocation5], %s523
        %p525 = pneg %p81
        %p526 = pneg %p78
        %s527 = sand.u32 %s34, 1
        %s528 = scalar_lea.sflag [#allocation6], %s527
        %s529 = sand.u32 %s94, 1
        %s530 = smul.addr %s529, 128
        %s531 = scalar_lea.vmem [#allocation7], %s530
        %p532 = pneg %p107
        %p533 = pneg %p104
        %s534 = sand.u32 %s34, 1
        %s535 = scalar_lea.sflag [#allocation9], %s534
        %s536 = sand.u32 %s120, 1
        %s537 = smul.addr %s536, 128
        %s538 = scalar_lea.vmem [#allocation8], %s537
        %p539 = pneg %p133
        %p540 = pneg %p130
        %s541 = sand.u32 %s34, 1
        %s542 = scalar_lea.sflag [#allocation9], %s541
        %s543 = sand.u32 %s146, 1
        %s544 = smul.addr %s543, 128
        %s545 = scalar_lea.vmem [#allocation10], %s544
        %p546 = pneg %p159
        %p547 = pneg %p156
        %p548 = pneg %p180
        %p549 = pneg %p177
        %p550 = pneg %p201
        %p551 = pneg %p198
        %p552 = pneg %p222
        %p553 = pneg %p219
        %p554 = pneg %p243
        %p555 = pneg %p240
        %p556 = pneg %p269
        %p557 = pneg %p266
        %s558 = sand.u32 %s256, 1
        %s559 = scalar_lea.sflag [#allocation4], %s558
        %s560 = sand.u32 %s256, 1
        %s561 = smul.addr %s560, 128
        %s562 = scalar_lea.vmem [#allocation17], %s561
        %s563 = smul.u32 16, %s34
        %s564 = smul.u32 16, %s34
        %s565 = smul.u32 16, %s34
        %s566 = smul.u32 16, %s34
        %s567 = smul.u32 16, %s34
        %s568 = smul.u32 16, %s34
        %v570 = vld [vmem:[%s456] sm:$0xff]
        %v571 = vld [vmem:[%s456 + $0x8] sm:$0xff]
        %v572 = vld [vmem:[%s456 + $0x10] sm:$0xff]
        %v573 = vld [vmem:[%s456 + $0x18] sm:$0xff]
        %v574 = vld [vmem:[%s456 + $0x20] sm:$0xff]
        %v575 = vld [vmem:[%s456 + $0x28] sm:$0xff]
        %v576 = vld [vmem:[%s456 + $0x30] sm:$0xff]
        %v577 = vld [vmem:[%s456 + $0x38] sm:$0xff]
        %v578 = vld [vmem:[%s456 + $0x40] sm:$0xff]
        %v579 = vld [vmem:[%s456 + $0x48] sm:$0xff]
        %v580 = vld [vmem:[%s456 + $0x50] sm:$0xff]
        %v581 = vld [vmem:[%s456 + $0x58] sm:$0xff]
        %v582 = vld [vmem:[%s456 + $0x60] sm:$0xff]
        %v583 = vld [vmem:[%s456 + $0x68] sm:$0xff]
        %v584 = vld [vmem:[%s456 + $0x70] sm:$0xff]
        %v585 = vld [vmem:[%s456 + $0x78] sm:$0xff]
        %v586 = vpack.c.bf16 %v571, %v570
        %v587 = vpack.c.bf16 %v573, %v572
        %v588 = vpack.c.bf16 %v575, %v574
        %v589 = vpack.c.bf16 %v577, %v576
        %v590 = vpack.c.bf16 %v579, %v578
        %v591 = vpack.c.bf16 %v581, %v580
        %v592 = vpack.c.bf16 %v583, %v582
        %v593 = vpack.c.bf16 %v585, %v584
        %v594 = vld [vmem:[#allocation11] sm:$0xf]
        %v595 = vld [vmem:[#allocation11 + $0x4] sm:$0xf]
        %v596 = vld [vmem:[#allocation11 + $0x8] sm:$0xf]
        %v597 = vld [vmem:[#allocation11 + $0xc] sm:$0xf]
        %v598 = vld [vmem:[#allocation11 + $0x10] sm:$0xf]
        %v599 = vld [vmem:[#allocation11 + $0x14] sm:$0xf]
        %v600 = vld [vmem:[#allocation11 + $0x18] sm:$0xf]
        %v601 = vld [vmem:[#allocation11 + $0x1c] sm:$0xf]
        %v602 = vld [vmem:[#allocation11 + $0x20] sm:$0xf]
        %v603 = vld [vmem:[#allocation11 + $0x24] sm:$0xf]
        %v604 = vld [vmem:[#allocation11 + $0x28] sm:$0xf]
        %v605 = vld [vmem:[#allocation11 + $0x2c] sm:$0xf]
        %v606 = vld [vmem:[#allocation11 + $0x30] sm:$0xf]
        %v607 = vld [vmem:[#allocation11 + $0x34] sm:$0xf]
        %v608 = vld [vmem:[#allocation11 + $0x38] sm:$0xf]
        %v609 = vld [vmem:[#allocation11 + $0x3c] sm:$0xf]
        %v610 = vld [vmem:[%s465] sm:$0xff]
        %v611 = vld [vmem:[%s465 + $0x8] sm:$0xff]
        %v612 = vld [vmem:[%s465 + $0x10] sm:$0xff]
        %v613 = vld [vmem:[%s465 + $0x18] sm:$0xff]
        %v614 = vld [vmem:[%s465 + $0x20] sm:$0xff]
        %v615 = vld [vmem:[%s465 + $0x28] sm:$0xff]
        %v616 = vld [vmem:[%s465 + $0x30] sm:$0xff]
        %v617 = vld [vmem:[%s465 + $0x38] sm:$0xff]
        %v618 = vld [vmem:[%s465 + $0x40] sm:$0xff]
        %v619 = vld [vmem:[%s465 + $0x48] sm:$0xff]
        %v620 = vld [vmem:[%s465 + $0x50] sm:$0xff]
        %v621 = vld [vmem:[%s465 + $0x58] sm:$0xff]
        %v622 = vld [vmem:[%s465 + $0x60] sm:$0xff]
        %v623 = vld [vmem:[%s465 + $0x68] sm:$0xff]
        %v624 = vld [vmem:[%s465 + $0x70] sm:$0xff]
        %v625 = vld [vmem:[%s465 + $0x78] sm:$0xff]
        %v642 = vunpack.c.l.b16 %v594
        %v643 = vunpack.c.l.b16 %v595
        %v644 = vunpack.c.l.b16 %v596
        %v645 = vunpack.c.l.b16 %v597
        %v646 = vunpack.c.l.b16 %v598
        %v647 = vunpack.c.l.b16 %v599
        %v648 = vunpack.c.l.b16 %v600
        %v649 = vunpack.c.l.b16 %v601
        %v650 = vunpack.c.l.b16 %v602
        %v651 = vunpack.c.l.b16 %v603
        %v652 = vunpack.c.l.b16 %v604
        %v653 = vunpack.c.l.b16 %v605
        %v654 = vunpack.c.l.b16 %v606
        %v655 = vunpack.c.l.b16 %v607
        %v656 = vunpack.c.l.b16 %v608
        %v657 = vunpack.c.l.b16 %v609
        %v658 = vpack.c.b16 %v643, %v642
        %v659 = vpack.c.b16 %v645, %v644
        %v660 = vpack.c.b16 %v647, %v646
        %v661 = vpack.c.b16 %v649, %v648
        %v662 = vpack.c.b16 %v651, %v650
        %v663 = vpack.c.b16 %v653, %v652
        %v664 = vpack.c.b16 %v655, %v654
        %v665 = vpack.c.b16 %v657, %v656
        %674 = vmatprep.subr.bf16.mxu0 0
        %675 = vmatpush1.bf16.msra.mxu0 %v665
        %676 = vmatprep.subr.bf16.mxu0 0
        %677 = vmatpush1.bf16.msra.mxu0 %v664
        %678 = vmatprep.subr.bf16.mxu0 0
        %679 = vmatpush1.bf16.msra.mxu0 %v663
        %680 = vmatprep.subr.bf16.mxu0 0
        %681 = vmatpush1.bf16.msra.mxu0 %v662
        %682 = vmatprep.subr.bf16.mxu0 0
        %683 = vmatpush1.bf16.msra.mxu0 %v661
        %684 = vmatprep.subr.bf16.mxu0 0
        %685 = vmatpush1.bf16.msra.mxu0 %v660
        %686 = vmatprep.subr.bf16.mxu0 0
        %687 = vmatpush1.bf16.msra.mxu0 %v659
        %688 = vmatprep.subr.bf16.mxu0 0
        %689 = vmatpush1.bf16.msra.mxu0 %v658
        %690 = vmatprep.subr.bf16.mxu0 0
        %691 = vmatpush2.bf16.msra.mxu0 0
        %692 = vmatprep.subr.bf16.mxu0 0
        %693 = vmatpush2.bf16.msra.mxu0 0
        %694 = vmatprep.subr.bf16.mxu0 0
        %695 = vmatpush2.bf16.msra.mxu0 0
        %696 = vmatprep.subr.bf16.mxu0 0
        %697 = vmatpush2.bf16.msra.mxu0 0
        %698 = vmatprep.subr.bf16.mxu0 0
        %699 = vmatpush2.bf16.msra.mxu0 0
        %700 = vmatprep.subr.bf16.mxu0 0
        %701 = vmatpush2.bf16.msra.mxu0 0
        %702 = vmatprep.subr.bf16.mxu0 0
        %703 = vmatpush2.bf16.msra.mxu0 0
        %704 = vmatprep.subr.bf16.mxu0 0
        %705 = vmatpush2.bf16.msra.mxu0 0
        %706 = vmatprep.mubr.bf16.mxu0 0
        %707 = vmatmul.mubr.bf16.gmra.mxu0 %v586
        %v708 = vpop.f32.mrf.mxu0
        %v709 = vadd.f32 %v610, %v708
        %v710 = vpop.f32.mrf.mxu0
        %v711 = vpop.f32.mrf.mxu0
        %v712 = vadd.f32 %v611, %v711
        %v713 = vpop.f32.mrf.mxu0
        %714 = vmatprep.mubr.bf16.mxu0 0
        %715 = vmatmul.mubr.bf16.gmra.mxu0 %v587
        %v716 = vpop.f32.mrf.mxu0
        %v717 = vadd.f32 %v612, %v716
        %v718 = vpop.f32.mrf.mxu0
        %v719 = vpop.f32.mrf.mxu0
        %v720 = vadd.f32 %v613, %v719
        %v721 = vpop.f32.mrf.mxu0
        %722 = vmatprep.mubr.bf16.mxu0 0
        %723 = vmatmul.mubr.bf16.gmra.mxu0 %v588
        %v724 = vpop.f32.mrf.mxu0
        %v725 = vadd.f32 %v614, %v724
        %v726 = vpop.f32.mrf.mxu0
        %v727 = vpop.f32.mrf.mxu0
        %v728 = vadd.f32 %v615, %v727
        %v729 = vpop.f32.mrf.mxu0
        %730 = vmatprep.mubr.bf16.mxu0 0
        %731 = vmatmul.mubr.bf16.gmra.mxu0 %v589
        %v732 = vpop.f32.mrf.mxu0
        %v733 = vadd.f32 %v616, %v732
        %v734 = vpop.f32.mrf.mxu0
        %v735 = vpop.f32.mrf.mxu0
        %v736 = vadd.f32 %v617, %v735
        %v737 = vpop.f32.mrf.mxu0
        %738 = vmatprep.mubr.bf16.mxu0 0
        %739 = vmatmul.mubr.bf16.gmra.mxu0 %v590
        %v740 = vpop.f32.mrf.mxu0
        %v741 = vadd.f32 %v618, %v740
        %v742 = vpop.f32.mrf.mxu0
        %v743 = vpop.f32.mrf.mxu0
        %v744 = vadd.f32 %v619, %v743
        %v745 = vpop.f32.mrf.mxu0
        %746 = vmatprep.mubr.bf16.mxu0 0
        %747 = vmatmul.mubr.bf16.gmra.mxu0 %v591
        %v748 = vpop.f32.mrf.mxu0
        %v749 = vadd.f32 %v620, %v748
        %v750 = vpop.f32.mrf.mxu0
        %v751 = vpop.f32.mrf.mxu0
        %v752 = vadd.f32 %v621, %v751
        %v753 = vpop.f32.mrf.mxu0
        %754 = vmatprep.mubr.bf16.mxu0 0
        %755 = vmatmul.mubr.bf16.gmra.mxu0 %v592
        %v756 = vpop.f32.mrf.mxu0
        %v757 = vadd.f32 %v622, %v756
        %v758 = vpop.f32.mrf.mxu0
        %v759 = vpop.f32.mrf.mxu0
        %v760 = vadd.f32 %v623, %v759
        %v761 = vpop.f32.mrf.mxu0
        %762 = vmatprep.mubr.bf16.mxu0 0
        %763 = vmatmul.mubr.bf16.gmra.mxu0 %v593
        %v764 = vpop.f32.mrf.mxu0
        %v765 = vadd.f32 %v624, %v764
        %v766 = vpop.f32.mrf.mxu0
        %v767 = vpop.f32.mrf.mxu0
        %v768 = vadd.f32 %v625, %v767
        %v769 = vpop.f32.mrf.mxu0
        %770 = vdwg.mxu0
        %vm771 = vcmp.gt.f32.partialorder %v709, 0.0
        %vm772 = vcmp.gt.f32.partialorder %v712, 0.0
        %vm773 = vcmp.gt.f32.partialorder %v717, 0.0
        %vm774 = vcmp.gt.f32.partialorder %v720, 0.0
        %vm775 = vcmp.gt.f32.partialorder %v725, 0.0
        %vm776 = vcmp.gt.f32.partialorder %v728, 0.0
        %vm777 = vcmp.gt.f32.partialorder %v733, 0.0
        %vm778 = vcmp.gt.f32.partialorder %v736, 0.0
        %vm779 = vcmp.gt.f32.partialorder %v741, 0.0
        %vm780 = vcmp.gt.f32.partialorder %v744, 0.0
        %vm781 = vcmp.gt.f32.partialorder %v749, 0.0
        %vm782 = vcmp.gt.f32.partialorder %v752, 0.0
        %vm783 = vcmp.gt.f32.partialorder %v757, 0.0
        %vm784 = vcmp.gt.f32.partialorder %v760, 0.0
        %vm785 = vcmp.gt.f32.partialorder %v765, 0.0
        %vm786 = vcmp.gt.f32.partialorder %v768, 0.0
        %v787 = vmul.f32 %v709, 0.2
        %v788 = vmul.f32 %v712, 0.2
        %v789 = vmul.f32 %v717, 0.2
        %v790 = vmul.f32 %v720, 0.2
        %v791 = vmul.f32 %v725, 0.2
        %v792 = vmul.f32 %v728, 0.2
        %v793 = vmul.f32 %v733, 0.2
        %v794 = vmul.f32 %v736, 0.2
        %v795 = vmul.f32 %v741, 0.2
        %v796 = vmul.f32 %v744, 0.2
        %v797 = vmul.f32 %v749, 0.2
        %v798 = vmul.f32 %v752, 0.2
        %v799 = vmul.f32 %v757, 0.2
        %v800 = vmul.f32 %v760, 0.2
        %v801 = vmul.f32 %v765, 0.2
        %v802 = vmul.f32 %v768, 0.2
        %v803 = vsel %vm771, %v709, %v787
        %v804 = vsel %vm772, %v712, %v788
        %v805 = vsel %vm773, %v717, %v789
        %v806 = vsel %vm774, %v720, %v790
        %v807 = vsel %vm775, %v725, %v791
        %v808 = vsel %vm776, %v728, %v792
        %v809 = vsel %vm777, %v733, %v793
        %v810 = vsel %vm778, %v736, %v794
        %v811 = vsel %vm779, %v741, %v795
        %v812 = vsel %vm780, %v744, %v796
        %v813 = vsel %vm781, %v749, %v797
        %v814 = vsel %vm782, %v752, %v798
        %v815 = vsel %vm783, %v757, %v799
        %v816 = vsel %vm784, %v760, %v800
        %v817 = vsel %vm785, %v765, %v801
        %v818 = vsel %vm786, %v768, %v802
        %v819 = vpack.c.bf16 %v804, %v803
        %v820 = vpack.c.bf16 %v806, %v805
        %v821 = vpack.c.bf16 %v808, %v807
        %v822 = vpack.c.bf16 %v810, %v809
        %v823 = vpack.c.bf16 %v812, %v811
        %v824 = vpack.c.bf16 %v814, %v813
        %v825 = vpack.c.bf16 %v816, %v815
        %v826 = vpack.c.bf16 %v818, %v817
        %v827 = vld [vmem:[#allocation13] sm:$0xf]
        %v828 = vld [vmem:[#allocation13 + $0x4] sm:$0xf]
        %v829 = vld [vmem:[#allocation13 + $0x8] sm:$0xf]
        %v830 = vld [vmem:[#allocation13 + $0xc] sm:$0xf]
        %v831 = vld [vmem:[#allocation13 + $0x10] sm:$0xf]
        %v832 = vld [vmem:[#allocation13 + $0x14] sm:$0xf]
        %v833 = vld [vmem:[#allocation13 + $0x18] sm:$0xf]
        %v834 = vld [vmem:[#allocation13 + $0x1c] sm:$0xf]
        %v835 = vld [vmem:[#allocation13 + $0x20] sm:$0xf]
        %v836 = vld [vmem:[#allocation13 + $0x24] sm:$0xf]
        %v837 = vld [vmem:[#allocation13 + $0x28] sm:$0xf]
        %v838 = vld [vmem:[#allocation13 + $0x2c] sm:$0xf]
        %v839 = vld [vmem:[#allocation13 + $0x30] sm:$0xf]
        %v840 = vld [vmem:[#allocation13 + $0x34] sm:$0xf]
        %v841 = vld [vmem:[#allocation13 + $0x38] sm:$0xf]
        %v842 = vld [vmem:[#allocation13 + $0x3c] sm:$0xf]
        %v843 = vld [vmem:[%s474] sm:$0xff]
        %v844 = vld [vmem:[%s474 + $0x8] sm:$0xff]
        %v845 = vld [vmem:[%s474 + $0x10] sm:$0xff]
        %v846 = vld [vmem:[%s474 + $0x18] sm:$0xff]
        %v847 = vld [vmem:[%s474 + $0x20] sm:$0xff]
        %v848 = vld [vmem:[%s474 + $0x28] sm:$0xff]
        %v849 = vld [vmem:[%s474 + $0x30] sm:$0xff]
        %v850 = vld [vmem:[%s474 + $0x38] sm:$0xff]
        %v851 = vld [vmem:[%s474 + $0x40] sm:$0xff]
        %v852 = vld [vmem:[%s474 + $0x48] sm:$0xff]
        %v853 = vld [vmem:[%s474 + $0x50] sm:$0xff]
        %v854 = vld [vmem:[%s474 + $0x58] sm:$0xff]
        %v855 = vld [vmem:[%s474 + $0x60] sm:$0xff]
        %v856 = vld [vmem:[%s474 + $0x68] sm:$0xff]
        %v857 = vld [vmem:[%s474 + $0x70] sm:$0xff]
        %v858 = vld [vmem:[%s474 + $0x78] sm:$0xff]
        %v875 = vunpack.c.l.b16 %v827
        %v876 = vunpack.c.l.b16 %v828
        %v877 = vunpack.c.l.b16 %v829
        %v878 = vunpack.c.l.b16 %v830
        %v879 = vunpack.c.l.b16 %v831
        %v880 = vunpack.c.l.b16 %v832
        %v881 = vunpack.c.l.b16 %v833
        %v882 = vunpack.c.l.b16 %v834
        %v883 = vunpack.c.l.b16 %v835
        %v884 = vunpack.c.l.b16 %v836
        %v885 = vunpack.c.l.b16 %v837
        %v886 = vunpack.c.l.b16 %v838
        %v887 = vunpack.c.l.b16 %v839
        %v888 = vunpack.c.l.b16 %v840
        %v889 = vunpack.c.l.b16 %v841
        %v890 = vunpack.c.l.b16 %v842
        %v891 = vpack.c.b16 %v876, %v875
        %v892 = vpack.c.b16 %v878, %v877
        %v893 = vpack.c.b16 %v880, %v879
        %v894 = vpack.c.b16 %v882, %v881
        %v895 = vpack.c.b16 %v884, %v883
        %v896 = vpack.c.b16 %v886, %v885
        %v897 = vpack.c.b16 %v888, %v887
        %v898 = vpack.c.b16 %v890, %v889
        %907 = vmatprep.subr.bf16.mxu0 0
        %908 = vmatpush1.bf16.msra.mxu0 %v898
        %909 = vmatprep.subr.bf16.mxu0 0
        %910 = vmatpush1.bf16.msra.mxu0 %v897
        %911 = vmatprep.subr.bf16.mxu0 0
        %912 = vmatpush1.bf16.msra.mxu0 %v896
        %913 = vmatprep.subr.bf16.mxu0 0
        %914 = vmatpush1.bf16.msra.mxu0 %v895
        %915 = vmatprep.subr.bf16.mxu0 0
        %916 = vmatpush1.bf16.msra.mxu0 %v894
        %917 = vmatprep.subr.bf16.mxu0 0
        %918 = vmatpush1.bf16.msra.mxu0 %v893
        %919 = vmatprep.subr.bf16.mxu0 0
        %920 = vmatpush1.bf16.msra.mxu0 %v892
        %921 = vmatprep.subr.bf16.mxu0 0
        %922 = vmatpush1.bf16.msra.mxu0 %v891
        %923 = vmatprep.subr.bf16.mxu0 0
        %924 = vmatpush2.bf16.msra.mxu0 0
        %925 = vmatprep.subr.bf16.mxu0 0
        %926 = vmatpush2.bf16.msra.mxu0 0
        %927 = vmatprep.subr.bf16.mxu0 0
        %928 = vmatpush2.bf16.msra.mxu0 0
        %929 = vmatprep.subr.bf16.mxu0 0
        %930 = vmatpush2.bf16.msra.mxu0 0
        %931 = vmatprep.subr.bf16.mxu0 0
        %932 = vmatpush2.bf16.msra.mxu0 0
        %933 = vmatprep.subr.bf16.mxu0 0
        %934 = vmatpush2.bf16.msra.mxu0 0
        %935 = vmatprep.subr.bf16.mxu0 0
        %936 = vmatpush2.bf16.msra.mxu0 0
        %937 = vmatprep.subr.bf16.mxu0 0
        %938 = vmatpush2.bf16.msra.mxu0 0
        %939 = vmatprep.mubr.bf16.mxu0 0
        %940 = vmatmul.mubr.bf16.gmra.mxu0 %v819
        %v941 = vpop.f32.mrf.mxu0
        %v942 = vadd.f32 %v843, %v941
        %v943 = vpop.f32.mrf.mxu0
        %v944 = vpop.f32.mrf.mxu0
        %v945 = vadd.f32 %v844, %v944
        %v946 = vpop.f32.mrf.mxu0
        %947 = vmatprep.mubr.bf16.mxu0 0
        %948 = vmatmul.mubr.bf16.gmra.mxu0 %v820
        %v949 = vpop.f32.mrf.mxu0
        %v950 = vadd.f32 %v845, %v949
        %v951 = vpop.f32.mrf.mxu0
        %v952 = vpop.f32.mrf.mxu0
        %v953 = vadd.f32 %v846, %v952
        %v954 = vpop.f32.mrf.mxu0
        %955 = vmatprep.mubr.bf16.mxu0 0
        %956 = vmatmul.mubr.bf16.gmra.mxu0 %v821
        %v957 = vpop.f32.mrf.mxu0
        %v958 = vadd.f32 %v847, %v957
        %v959 = vpop.f32.mrf.mxu0
        %v960 = vpop.f32.mrf.mxu0
        %v961 = vadd.f32 %v848, %v960
        %v962 = vpop.f32.mrf.mxu0
        %963 = vmatprep.mubr.bf16.mxu0 0
        %964 = vmatmul.mubr.bf16.gmra.mxu0 %v822
        %v965 = vpop.f32.mrf.mxu0
        %v966 = vadd.f32 %v849, %v965
        %v967 = vpop.f32.mrf.mxu0
        %v968 = vpop.f32.mrf.mxu0
        %v969 = vadd.f32 %v850, %v968
        %v970 = vpop.f32.mrf.mxu0
        %971 = vmatprep.mubr.bf16.mxu0 0
        %972 = vmatmul.mubr.bf16.gmra.mxu0 %v823
        %v973 = vpop.f32.mrf.mxu0
        %v974 = vadd.f32 %v851, %v973
        %v975 = vpop.f32.mrf.mxu0
        %v976 = vpop.f32.mrf.mxu0
        %v977 = vadd.f32 %v852, %v976
        %v978 = vpop.f32.mrf.mxu0
        %979 = vmatprep.mubr.bf16.mxu0 0
        %980 = vmatmul.mubr.bf16.gmra.mxu0 %v824
        %v981 = vpop.f32.mrf.mxu0
        %v982 = vadd.f32 %v853, %v981
        %v983 = vpop.f32.mrf.mxu0
        %v984 = vpop.f32.mrf.mxu0
        %v985 = vadd.f32 %v854, %v984
        %v986 = vpop.f32.mrf.mxu0
        %987 = vmatprep.mubr.bf16.mxu0 0
        %988 = vmatmul.mubr.bf16.gmra.mxu0 %v825
        %v989 = vpop.f32.mrf.mxu0
        %v990 = vadd.f32 %v855, %v989
        %v991 = vpop.f32.mrf.mxu0
        %v992 = vpop.f32.mrf.mxu0
        %v993 = vadd.f32 %v856, %v992
        %v994 = vpop.f32.mrf.mxu0
        %995 = vmatprep.mubr.bf16.mxu0 0
        %996 = vmatmul.mubr.bf16.gmra.mxu0 %v826
        %v997 = vpop.f32.mrf.mxu0
        %v998 = vadd.f32 %v857, %v997
        %v999 = vpop.f32.mrf.mxu0
        %v1000 = vpop.f32.mrf.mxu0
        %v1001 = vadd.f32 %v858, %v1000
        %v1002 = vpop.f32.mrf.mxu0
        %1003 = vdwg.mxu0
        %vm1004 = vcmp.gt.f32.partialorder %v942, 0.0
        %vm1005 = vcmp.gt.f32.partialorder %v945, 0.0
        %vm1006 = vcmp.gt.f32.partialorder %v950, 0.0
        %vm1007 = vcmp.gt.f32.partialorder %v953, 0.0
        %vm1008 = vcmp.gt.f32.partialorder %v958, 0.0
        %vm1009 = vcmp.gt.f32.partialorder %v961, 0.0
        %vm1010 = vcmp.gt.f32.partialorder %v966, 0.0
        %vm1011 = vcmp.gt.f32.partialorder %v969, 0.0
        %vm1012 = vcmp.gt.f32.partialorder %v974, 0.0
        %vm1013 = vcmp.gt.f32.partialorder %v977, 0.0
        %vm1014 = vcmp.gt.f32.partialorder %v982, 0.0
        %vm1015 = vcmp.gt.f32.partialorder %v985, 0.0
        %vm1016 = vcmp.gt.f32.partialorder %v990, 0.0
        %vm1017 = vcmp.gt.f32.partialorder %v993, 0.0
        %vm1018 = vcmp.gt.f32.partialorder %v998, 0.0
        %vm1019 = vcmp.gt.f32.partialorder %v1001, 0.0
        %v1020 = vmul.f32 %v942, 0.2
        %v1021 = vmul.f32 %v945, 0.2
        %v1022 = vmul.f32 %v950, 0.2
        %v1023 = vmul.f32 %v953, 0.2
        %v1024 = vmul.f32 %v958, 0.2
        %v1025 = vmul.f32 %v961, 0.2
        %v1026 = vmul.f32 %v966, 0.2
        %v1027 = vmul.f32 %v969, 0.2
        %v1028 = vmul.f32 %v974, 0.2
        %v1029 = vmul.f32 %v977, 0.2
        %v1030 = vmul.f32 %v982, 0.2
        %v1031 = vmul.f32 %v985, 0.2
        %v1032 = vmul.f32 %v990, 0.2
        %v1033 = vmul.f32 %v993, 0.2
        %v1034 = vmul.f32 %v998, 0.2
        %v1035 = vmul.f32 %v1001, 0.2
        %v1036 = vsel %vm1004, %v942, %v1020
        %v1037 = vsel %vm1005, %v945, %v1021
        %v1038 = vsel %vm1006, %v950, %v1022
        %v1039 = vsel %vm1007, %v953, %v1023
        %v1040 = vsel %vm1008, %v958, %v1024
        %v1041 = vsel %vm1009, %v961, %v1025
        %v1042 = vsel %vm1010, %v966, %v1026
        %v1043 = vsel %vm1011, %v969, %v1027
        %v1044 = vsel %vm1012, %v974, %v1028
        %v1045 = vsel %vm1013, %v977, %v1029
        %v1046 = vsel %vm1014, %v982, %v1030
        %v1047 = vsel %vm1015, %v985, %v1031
        %v1048 = vsel %vm1016, %v990, %v1032
        %v1049 = vsel %vm1017, %v993, %v1033
        %v1050 = vsel %vm1018, %v998, %v1034
        %v1051 = vsel %vm1019, %v1001, %v1035
        %v1052 = vpack.c.bf16 %v1037, %v1036
        %v1053 = vpack.c.bf16 %v1039, %v1038
        %v1054 = vpack.c.bf16 %v1041, %v1040
        %v1055 = vpack.c.bf16 %v1043, %v1042
        %v1056 = vpack.c.bf16 %v1045, %v1044
        %v1057 = vpack.c.bf16 %v1047, %v1046
        %v1058 = vpack.c.bf16 %v1049, %v1048
        %v1059 = vpack.c.bf16 %v1051, %v1050
        %v1060 = vld [vmem:[#allocation14] sm:$0xf]
        %v1061 = vld [vmem:[#allocation14 + $0x4] sm:$0xf]
        %v1062 = vld [vmem:[#allocation14 + $0x8] sm:$0xf]
        %v1063 = vld [vmem:[#allocation14 + $0xc] sm:$0xf]
        %v1064 = vld [vmem:[#allocation14 + $0x10] sm:$0xf]
        %v1065 = vld [vmem:[#allocation14 + $0x14] sm:$0xf]
        %v1066 = vld [vmem:[#allocation14 + $0x18] sm:$0xf]
        %v1067 = vld [vmem:[#allocation14 + $0x1c] sm:$0xf]
        %v1068 = vld [vmem:[#allocation14 + $0x20] sm:$0xf]
        %v1069 = vld [vmem:[#allocation14 + $0x24] sm:$0xf]
        %v1070 = vld [vmem:[#allocation14 + $0x28] sm:$0xf]
        %v1071 = vld [vmem:[#allocation14 + $0x2c] sm:$0xf]
        %v1072 = vld [vmem:[#allocation14 + $0x30] sm:$0xf]
        %v1073 = vld [vmem:[#allocation14 + $0x34] sm:$0xf]
        %v1074 = vld [vmem:[#allocation14 + $0x38] sm:$0xf]
        %v1075 = vld [vmem:[#allocation14 + $0x3c] sm:$0xf]
        %v1076 = vld [vmem:[%s483] sm:$0xff]
        %v1077 = vld [vmem:[%s483 + $0x8] sm:$0xff]
        %v1078 = vld [vmem:[%s483 + $0x10] sm:$0xff]
        %v1079 = vld [vmem:[%s483 + $0x18] sm:$0xff]
        %v1080 = vld [vmem:[%s483 + $0x20] sm:$0xff]
        %v1081 = vld [vmem:[%s483 + $0x28] sm:$0xff]
        %v1082 = vld [vmem:[%s483 + $0x30] sm:$0xff]
        %v1083 = vld [vmem:[%s483 + $0x38] sm:$0xff]
        %v1084 = vld [vmem:[%s483 + $0x40] sm:$0xff]
        %v1085 = vld [vmem:[%s483 + $0x48] sm:$0xff]
        %v1086 = vld [vmem:[%s483 + $0x50] sm:$0xff]
        %v1087 = vld [vmem:[%s483 + $0x58] sm:$0xff]
        %v1088 = vld [vmem:[%s483 + $0x60] sm:$0xff]
        %v1089 = vld [vmem:[%s483 + $0x68] sm:$0xff]
        %v1090 = vld [vmem:[%s483 + $0x70] sm:$0xff]
        %v1091 = vld [vmem:[%s483 + $0x78] sm:$0xff]
        %v1108 = vunpack.c.l.b16 %v1060
        %v1109 = vunpack.c.l.b16 %v1061
        %v1110 = vunpack.c.l.b16 %v1062
        %v1111 = vunpack.c.l.b16 %v1063
        %v1112 = vunpack.c.l.b16 %v1064
        %v1113 = vunpack.c.l.b16 %v1065
        %v1114 = vunpack.c.l.b16 %v1066
        %v1115 = vunpack.c.l.b16 %v1067
        %v1116 = vunpack.c.l.b16 %v1068
        %v1117 = vunpack.c.l.b16 %v1069
        %v1118 = vunpack.c.l.b16 %v1070
        %v1119 = vunpack.c.l.b16 %v1071
        %v1120 = vunpack.c.l.b16 %v1072
        %v1121 = vunpack.c.l.b16 %v1073
        %v1122 = vunpack.c.l.b16 %v1074
        %v1123 = vunpack.c.l.b16 %v1075
        %v1124 = vpack.c.b16 %v1109, %v1108
        %v1125 = vpack.c.b16 %v1111, %v1110
        %v1126 = vpack.c.b16 %v1113, %v1112
        %v1127 = vpack.c.b16 %v1115, %v1114
        %v1128 = vpack.c.b16 %v1117, %v1116
        %v1129 = vpack.c.b16 %v1119, %v1118
        %v1130 = vpack.c.b16 %v1121, %v1120
        %v1131 = vpack.c.b16 %v1123, %v1122
        %1140 = vmatprep.subr.bf16.mxu0 0
        %1141 = vmatpush1.bf16.msra.mxu0 %v1131
        %1142 = vmatprep.subr.bf16.mxu0 0
        %1143 = vmatpush1.bf16.msra.mxu0 %v1130
        %1144 = vmatprep.subr.bf16.mxu0 0
        %1145 = vmatpush1.bf16.msra.mxu0 %v1129
        %1146 = vmatprep.subr.bf16.mxu0 0
        %1147 = vmatpush1.bf16.msra.mxu0 %v1128
        %1148 = vmatprep.subr.bf16.mxu0 0
        %1149 = vmatpush1.bf16.msra.mxu0 %v1127
        %1150 = vmatprep.subr.bf16.mxu0 0
        %1151 = vmatpush1.bf16.msra.mxu0 %v1126
        %1152 = vmatprep.subr.bf16.mxu0 0
        %1153 = vmatpush1.bf16.msra.mxu0 %v1125
        %1154 = vmatprep.subr.bf16.mxu0 0
        %1155 = vmatpush1.bf16.msra.mxu0 %v1124
        %1156 = vmatprep.subr.bf16.mxu0 0
        %1157 = vmatpush2.bf16.msra.mxu0 0
        %1158 = vmatprep.subr.bf16.mxu0 0
        %1159 = vmatpush2.bf16.msra.mxu0 0
        %1160 = vmatprep.subr.bf16.mxu0 0
        %1161 = vmatpush2.bf16.msra.mxu0 0
        %1162 = vmatprep.subr.bf16.mxu0 0
        %1163 = vmatpush2.bf16.msra.mxu0 0
        %1164 = vmatprep.subr.bf16.mxu0 0
        %1165 = vmatpush2.bf16.msra.mxu0 0
        %1166 = vmatprep.subr.bf16.mxu0 0
        %1167 = vmatpush2.bf16.msra.mxu0 0
        %1168 = vmatprep.subr.bf16.mxu0 0
        %1169 = vmatpush2.bf16.msra.mxu0 0
        %1170 = vmatprep.subr.bf16.mxu0 0
        %1171 = vmatpush2.bf16.msra.mxu0 0
        %1172 = vmatprep.mubr.bf16.mxu0 0
        %1173 = vmatmul.mubr.bf16.gmra.mxu0 %v1052
        %v1174 = vpop.f32.mrf.mxu0
        %v1175 = vadd.f32 %v1076, %v1174
        %v1176 = vpop.f32.mrf.mxu0
        %v1177 = vpop.f32.mrf.mxu0
        %v1178 = vadd.f32 %v1077, %v1177
        %v1179 = vpop.f32.mrf.mxu0
        %1180 = vmatprep.mubr.bf16.mxu0 0
        %1181 = vmatmul.mubr.bf16.gmra.mxu0 %v1053
        %v1182 = vpop.f32.mrf.mxu0
        %v1183 = vadd.f32 %v1078, %v1182
        %v1184 = vpop.f32.mrf.mxu0
        %v1185 = vpop.f32.mrf.mxu0
        %v1186 = vadd.f32 %v1079, %v1185
        %v1187 = vpop.f32.mrf.mxu0
        %1188 = vmatprep.mubr.bf16.mxu0 0
        %1189 = vmatmul.mubr.bf16.gmra.mxu0 %v1054
        %v1190 = vpop.f32.mrf.mxu0
        %v1191 = vadd.f32 %v1080, %v1190
        %v1192 = vpop.f32.mrf.mxu0
        %v1193 = vpop.f32.mrf.mxu0
        %v1194 = vadd.f32 %v1081, %v1193
        %v1195 = vpop.f32.mrf.mxu0
        %1196 = vmatprep.mubr.bf16.mxu0 0
        %1197 = vmatmul.mubr.bf16.gmra.mxu0 %v1055
        %v1198 = vpop.f32.mrf.mxu0
        %v1199 = vadd.f32 %v1082, %v1198
        %v1200 = vpop.f32.mrf.mxu0
        %v1201 = vpop.f32.mrf.mxu0
        %v1202 = vadd.f32 %v1083, %v1201
        %v1203 = vpop.f32.mrf.mxu0
        %1204 = vmatprep.mubr.bf16.mxu0 0
        %1205 = vmatmul.mubr.bf16.gmra.mxu0 %v1056
        %v1206 = vpop.f32.mrf.mxu0
        %v1207 = vadd.f32 %v1084, %v1206
        %v1208 = vpop.f32.mrf.mxu0
        %v1209 = vpop.f32.mrf.mxu0
        %v1210 = vadd.f32 %v1085, %v1209
        %v1211 = vpop.f32.mrf.mxu0
        %1212 = vmatprep.mubr.bf16.mxu0 0
        %1213 = vmatmul.mubr.bf16.gmra.mxu0 %v1057
        %v1214 = vpop.f32.mrf.mxu0
        %v1215 = vadd.f32 %v1086, %v1214
        %v1216 = vpop.f32.mrf.mxu0
        %v1217 = vpop.f32.mrf.mxu0
        %v1218 = vadd.f32 %v1087, %v1217
        %v1219 = vpop.f32.mrf.mxu0
        %1220 = vmatprep.mubr.bf16.mxu0 0
        %1221 = vmatmul.mubr.bf16.gmra.mxu0 %v1058
        %v1222 = vpop.f32.mrf.mxu0
        %v1223 = vadd.f32 %v1088, %v1222
        %v1224 = vpop.f32.mrf.mxu0
        %v1225 = vpop.f32.mrf.mxu0
        %v1226 = vadd.f32 %v1089, %v1225
        %v1227 = vpop.f32.mrf.mxu0
        %1228 = vmatprep.mubr.bf16.mxu0 0
        %1229 = vmatmul.mubr.bf16.gmra.mxu0 %v1059
        %v1230 = vpop.f32.mrf.mxu0
        %v1231 = vadd.f32 %v1090, %v1230
        %v1232 = vpop.f32.mrf.mxu0
        %v1233 = vpop.f32.mrf.mxu0
        %v1234 = vadd.f32 %v1091, %v1233
        %v1235 = vpop.f32.mrf.mxu0
        %1236 = vdwg.mxu0
        %vm1237 = vcmp.gt.f32.partialorder %v1175, 0.0
        %vm1238 = vcmp.gt.f32.partialorder %v1178, 0.0
        %vm1239 = vcmp.gt.f32.partialorder %v1183, 0.0
        %vm1240 = vcmp.gt.f32.partialorder %v1186, 0.0
        %vm1241 = vcmp.gt.f32.partialorder %v1191, 0.0
        %vm1242 = vcmp.gt.f32.partialorder %v1194, 0.0
        %vm1243 = vcmp.gt.f32.partialorder %v1199, 0.0
        %vm1244 = vcmp.gt.f32.partialorder %v1202, 0.0
        %vm1245 = vcmp.gt.f32.partialorder %v1207, 0.0
        %vm1246 = vcmp.gt.f32.partialorder %v1210, 0.0
        %vm1247 = vcmp.gt.f32.partialorder %v1215, 0.0
        %vm1248 = vcmp.gt.f32.partialorder %v1218, 0.0
        %vm1249 = vcmp.gt.f32.partialorder %v1223, 0.0
        %vm1250 = vcmp.gt.f32.partialorder %v1226, 0.0
        %vm1251 = vcmp.gt.f32.partialorder %v1231, 0.0
        %vm1252 = vcmp.gt.f32.partialorder %v1234, 0.0
        %v1253 = vmul.f32 %v1175, 0.2
        %v1254 = vmul.f32 %v1178, 0.2
        %v1255 = vmul.f32 %v1183, 0.2
        %v1256 = vmul.f32 %v1186, 0.2
        %v1257 = vmul.f32 %v1191, 0.2
        %v1258 = vmul.f32 %v1194, 0.2
        %v1259 = vmul.f32 %v1199, 0.2
        %v1260 = vmul.f32 %v1202, 0.2
        %v1261 = vmul.f32 %v1207, 0.2
        %v1262 = vmul.f32 %v1210, 0.2
        %v1263 = vmul.f32 %v1215, 0.2
        %v1264 = vmul.f32 %v1218, 0.2
        %v1265 = vmul.f32 %v1223, 0.2
        %v1266 = vmul.f32 %v1226, 0.2
        %v1267 = vmul.f32 %v1231, 0.2
        %v1268 = vmul.f32 %v1234, 0.2
        %v1269 = vsel %vm1237, %v1175, %v1253
        %v1270 = vsel %vm1238, %v1178, %v1254
        %v1271 = vsel %vm1239, %v1183, %v1255
        %v1272 = vsel %vm1240, %v1186, %v1256
        %v1273 = vsel %vm1241, %v1191, %v1257
        %v1274 = vsel %vm1242, %v1194, %v1258
        %v1275 = vsel %vm1243, %v1199, %v1259
        %v1276 = vsel %vm1244, %v1202, %v1260
        %v1277 = vsel %vm1245, %v1207, %v1261
        %v1278 = vsel %vm1246, %v1210, %v1262
        %v1279 = vsel %vm1247, %v1215, %v1263
        %v1280 = vsel %vm1248, %v1218, %v1264
        %v1281 = vsel %vm1249, %v1223, %v1265
        %v1282 = vsel %vm1250, %v1226, %v1266
        %v1283 = vsel %vm1251, %v1231, %v1267
        %v1284 = vsel %vm1252, %v1234, %v1268
        %v1285 = vpack.c.bf16 %v1270, %v1269
        %v1286 = vpack.c.bf16 %v1272, %v1271
        %v1287 = vpack.c.bf16 %v1274, %v1273
        %v1288 = vpack.c.bf16 %v1276, %v1275
        %v1289 = vpack.c.bf16 %v1278, %v1277
        %v1290 = vpack.c.bf16 %v1280, %v1279
        %v1291 = vpack.c.bf16 %v1282, %v1281
        %v1292 = vpack.c.bf16 %v1284, %v1283
        %v1293 = vld [vmem:[#allocation16] sm:$0xf]
        %v1294 = vld [vmem:[#allocation16 + $0x4] sm:$0xf]
        %v1295 = vld [vmem:[#allocation16 + $0x8] sm:$0xf]
        %v1296 = vld [vmem:[#allocation16 + $0xc] sm:$0xf]
        %v1297 = vld [vmem:[#allocation16 + $0x10] sm:$0xf]
        %v1298 = vld [vmem:[#allocation16 + $0x14] sm:$0xf]
        %v1299 = vld [vmem:[#allocation16 + $0x18] sm:$0xf]
        %v1300 = vld [vmem:[#allocation16 + $0x1c] sm:$0xf]
        %v1301 = vld [vmem:[#allocation16 + $0x20] sm:$0xf]
        %v1302 = vld [vmem:[#allocation16 + $0x24] sm:$0xf]
        %v1303 = vld [vmem:[#allocation16 + $0x28] sm:$0xf]
        %v1304 = vld [vmem:[#allocation16 + $0x2c] sm:$0xf]
        %v1305 = vld [vmem:[#allocation16 + $0x30] sm:$0xf]
        %v1306 = vld [vmem:[#allocation16 + $0x34] sm:$0xf]
        %v1307 = vld [vmem:[#allocation16 + $0x38] sm:$0xf]
        %v1308 = vld [vmem:[#allocation16 + $0x3c] sm:$0xf]
        %v1309 = vld [vmem:[%s492] sm:$0xff]
        %v1310 = vld [vmem:[%s492 + $0x8] sm:$0xff]
        %v1311 = vld [vmem:[%s492 + $0x10] sm:$0xff]
        %v1312 = vld [vmem:[%s492 + $0x18] sm:$0xff]
        %v1313 = vld [vmem:[%s492 + $0x20] sm:$0xff]
        %v1314 = vld [vmem:[%s492 + $0x28] sm:$0xff]
        %v1315 = vld [vmem:[%s492 + $0x30] sm:$0xff]
        %v1316 = vld [vmem:[%s492 + $0x38] sm:$0xff]
        %v1317 = vld [vmem:[%s492 + $0x40] sm:$0xff]
        %v1318 = vld [vmem:[%s492 + $0x48] sm:$0xff]
        %v1319 = vld [vmem:[%s492 + $0x50] sm:$0xff]
        %v1320 = vld [vmem:[%s492 + $0x58] sm:$0xff]
        %v1321 = vld [vmem:[%s492 + $0x60] sm:$0xff]
        %v1322 = vld [vmem:[%s492 + $0x68] sm:$0xff]
        %v1323 = vld [vmem:[%s492 + $0x70] sm:$0xff]
        %v1324 = vld [vmem:[%s492 + $0x78] sm:$0xff]
        %v1341 = vunpack.c.l.b16 %v1293
        %v1342 = vunpack.c.l.b16 %v1294
        %v1343 = vunpack.c.l.b16 %v1295
        %v1344 = vunpack.c.l.b16 %v1296
        %v1345 = vunpack.c.l.b16 %v1297
        %v1346 = vunpack.c.l.b16 %v1298
        %v1347 = vunpack.c.l.b16 %v1299
        %v1348 = vunpack.c.l.b16 %v1300
        %v1349 = vunpack.c.l.b16 %v1301
        %v1350 = vunpack.c.l.b16 %v1302
        %v1351 = vunpack.c.l.b16 %v1303
        %v1352 = vunpack.c.l.b16 %v1304
        %v1353 = vunpack.c.l.b16 %v1305
        %v1354 = vunpack.c.l.b16 %v1306
        %v1355 = vunpack.c.l.b16 %v1307
        %v1356 = vunpack.c.l.b16 %v1308
        %v1357 = vpack.c.b16 %v1342, %v1341
        %v1358 = vpack.c.b16 %v1344, %v1343
        %v1359 = vpack.c.b16 %v1346, %v1345
        %v1360 = vpack.c.b16 %v1348, %v1347
        %v1361 = vpack.c.b16 %v1350, %v1349
        %v1362 = vpack.c.b16 %v1352, %v1351
        %v1363 = vpack.c.b16 %v1354, %v1353
        %v1364 = vpack.c.b16 %v1356, %v1355
        %1373 = vmatprep.subr.bf16.mxu0 0
        %1374 = vmatpush1.bf16.msra.mxu0 %v1364
        %1375 = vmatprep.subr.bf16.mxu0 0
        %1376 = vmatpush1.bf16.msra.mxu0 %v1363
        %1377 = vmatprep.subr.bf16.mxu0 0
        %1378 = vmatpush1.bf16.msra.mxu0 %v1362
        %1379 = vmatprep.subr.bf16.mxu0 0
        %1380 = vmatpush1.bf16.msra.mxu0 %v1361
        %1381 = vmatprep.subr.bf16.mxu0 0
        %1382 = vmatpush1.bf16.msra.mxu0 %v1360
        %1383 = vmatprep.subr.bf16.mxu0 0
        %1384 = vmatpush1.bf16.msra.mxu0 %v1359
        %1385 = vmatprep.subr.bf16.mxu0 0
        %1386 = vmatpush1.bf16.msra.mxu0 %v1358
        %1387 = vmatprep.subr.bf16.mxu0 0
        %1388 = vmatpush1.bf16.msra.mxu0 %v1357
        %1389 = vmatprep.subr.bf16.mxu0 0
        %1390 = vmatpush2.bf16.msra.mxu0 0
        %1391 = vmatprep.subr.bf16.mxu0 0
        %1392 = vmatpush2.bf16.msra.mxu0 0
        %1393 = vmatprep.subr.bf16.mxu0 0
        %1394 = vmatpush2.bf16.msra.mxu0 0
        %1395 = vmatprep.subr.bf16.mxu0 0
        %1396 = vmatpush2.bf16.msra.mxu0 0
        %1397 = vmatprep.subr.bf16.mxu0 0
        %1398 = vmatpush2.bf16.msra.mxu0 0
        %1399 = vmatprep.subr.bf16.mxu0 0
        %1400 = vmatpush2.bf16.msra.mxu0 0
        %1401 = vmatprep.subr.bf16.mxu0 0
        %1402 = vmatpush2.bf16.msra.mxu0 0
        %1403 = vmatprep.subr.bf16.mxu0 0
        %1404 = vmatpush2.bf16.msra.mxu0 0
        %1405 = vmatprep.mubr.bf16.mxu0 0
        %1406 = vmatmul.mubr.bf16.gmra.mxu0 %v1285
        %v1407 = vpop.f32.mrf.mxu0
        %v1408 = vadd.f32 %v1309, %v1407
        %v1409 = vpop.f32.mrf.mxu0
        %v1410 = vpop.f32.mrf.mxu0
        %v1411 = vadd.f32 %v1310, %v1410
        %v1412 = vpop.f32.mrf.mxu0
        %1413 = vmatprep.mubr.bf16.mxu0 0
        %1414 = vmatmul.mubr.bf16.gmra.mxu0 %v1286
        %v1415 = vpop.f32.mrf.mxu0
        %v1416 = vadd.f32 %v1311, %v1415
        %v1417 = vpop.f32.mrf.mxu0
        %v1418 = vpop.f32.mrf.mxu0
        %v1419 = vadd.f32 %v1312, %v1418
        %v1420 = vpop.f32.mrf.mxu0
        %1421 = vmatprep.mubr.bf16.mxu0 0
        %1422 = vmatmul.mubr.bf16.gmra.mxu0 %v1287
        %v1423 = vpop.f32.mrf.mxu0
        %v1424 = vadd.f32 %v1313, %v1423
        %v1425 = vpop.f32.mrf.mxu0
        %v1426 = vpop.f32.mrf.mxu0
        %v1427 = vadd.f32 %v1314, %v1426
        %v1428 = vpop.f32.mrf.mxu0
        %1429 = vmatprep.mubr.bf16.mxu0 0
        %1430 = vmatmul.mubr.bf16.gmra.mxu0 %v1288
        %v1431 = vpop.f32.mrf.mxu0
        %v1432 = vadd.f32 %v1315, %v1431
        %v1433 = vpop.f32.mrf.mxu0
        %v1434 = vpop.f32.mrf.mxu0
        %v1435 = vadd.f32 %v1316, %v1434
        %v1436 = vpop.f32.mrf.mxu0
        %1437 = vmatprep.mubr.bf16.mxu0 0
        %1438 = vmatmul.mubr.bf16.gmra.mxu0 %v1289
        %v1439 = vpop.f32.mrf.mxu0
        %v1440 = vadd.f32 %v1317, %v1439
        %v1441 = vpop.f32.mrf.mxu0
        %v1442 = vpop.f32.mrf.mxu0
        %v1443 = vadd.f32 %v1318, %v1442
        %v1444 = vpop.f32.mrf.mxu0
        %1445 = vmatprep.mubr.bf16.mxu0 0
        %1446 = vmatmul.mubr.bf16.gmra.mxu0 %v1290
        %v1447 = vpop.f32.mrf.mxu0
        %v1448 = vadd.f32 %v1319, %v1447
        %v1449 = vpop.f32.mrf.mxu0
        %v1450 = vpop.f32.mrf.mxu0
        %v1451 = vadd.f32 %v1320, %v1450
        %v1452 = vpop.f32.mrf.mxu0
        %1453 = vmatprep.mubr.bf16.mxu0 0
        %1454 = vmatmul.mubr.bf16.gmra.mxu0 %v1291
        %v1455 = vpop.f32.mrf.mxu0
        %v1456 = vadd.f32 %v1321, %v1455
        %v1457 = vpop.f32.mrf.mxu0
        %v1458 = vpop.f32.mrf.mxu0
        %v1459 = vadd.f32 %v1322, %v1458
        %v1460 = vpop.f32.mrf.mxu0
        %1461 = vmatprep.mubr.bf16.mxu0 0
        %1462 = vmatmul.mubr.bf16.gmra.mxu0 %v1292
        %v1463 = vpop.f32.mrf.mxu0
        %v1464 = vadd.f32 %v1323, %v1463
        %v1465 = vpop.f32.mrf.mxu0
        %v1466 = vpop.f32.mrf.mxu0
        %v1467 = vadd.f32 %v1324, %v1466
        %v1468 = vpop.f32.mrf.mxu0
        %1469 = vdwg.mxu0
        %v1470 = vtanh.pop %v1408
        %v1471 = vtanh.pop %v1411
        %v1472 = vtanh.pop %v1416
        %v1473 = vtanh.pop %v1419
        %v1474 = vtanh.pop %v1424
        %v1475 = vtanh.pop %v1427
        %v1476 = vtanh.pop %v1432
        %v1477 = vtanh.pop %v1435
        %v1478 = vtanh.pop %v1440
        %v1479 = vtanh.pop %v1443
        %v1480 = vtanh.pop %v1448
        %v1481 = vtanh.pop %v1451
        %v1482 = vtanh.pop %v1456
        %v1483 = vtanh.pop %v1459
        %v1484 = vtanh.pop %v1464
        %v1485 = vtanh.pop %v1467
        %1486 = vst [vmem:[%s562] sm:$0xff] %v1470
        %1487 = vst [vmem:[%s562 + $0x8] sm:$0xff] %v1471
        %1488 = vst [vmem:[%s562 + $0x10] sm:$0xff] %v1472
        %1489 = vst [vmem:[%s562 + $0x18] sm:$0xff] %v1473
        %1490 = vst [vmem:[%s562 + $0x20] sm:$0xff] %v1474
        %1491 = vst [vmem:[%s562 + $0x28] sm:$0xff] %v1475
        %1492 = vst [vmem:[%s562 + $0x30] sm:$0xff] %v1476
        %1493 = vst [vmem:[%s562 + $0x38] sm:$0xff] %v1477
        %1494 = vst [vmem:[%s562 + $0x40] sm:$0xff] %v1478
        %1495 = vst [vmem:[%s562 + $0x48] sm:$0xff] %v1479
        %1496 = vst [vmem:[%s562 + $0x50] sm:$0xff] %v1480
        %1497 = vst [vmem:[%s562 + $0x58] sm:$0xff] %v1481
        %1498 = vst [vmem:[%s562 + $0x60] sm:$0xff] %v1482
        %1499 = vst [vmem:[%s562 + $0x68] sm:$0xff] %v1483
        %1500 = vst [vmem:[%s562 + $0x70] sm:$0xff] %v1484
        %1501 = vst [vmem:[%s562 + $0x78] sm:$0xff] %v1485
        %s1502 = sand.u32 %s256, 1
        %s1503 = scalar_lea.sflag [#allocation4], %s1502
        %s1504 = sand.u32 %s256, 1
        %s1505 = smul.addr %s1504, 128
        %s1506 = scalar_lea.vmem [#allocation17], %s1505
        // Predicated region
        $region93: #{tpu_custom_call.1} parent=55 // pred_check
          %p1507 = pneg %p266
        $region94: #{tpu_custom_call.1} parent=55 // pred_check_branch
          %1509 = sbr.rel (%p1507) target = $region96
        $region95: #{tpu_custom_call.1} parent=55 // pred_region
          %s1510 = smul.u32 16, %s34
          %s1512 = ssub.s32 2048, 2048
          %1513 = vsyncadd %s1503, %s1512
          %s1514 = smul.addr %s1510, 128
          %s1515 = scalar_lea.hbm %s9, %s1514
          %s1516 = sshll.u32 %s1506, 4
          %s1517 = int_to_ptr.vmem [resolvable:$true] %s1516
          %1522 = dma.vmem_to_hbm [thread:$0]  %s1517, 2048, %s1515, %s1503, 128, 128, 8
        $region96: #{tpu_custom_call.1} parent=55 // pred_fallthru
          _
      $region56: #{tpu_custom_call.1} parent=5 // pred_fallthru
        _
      %p1523 = scmp.le.s32.totalorder 2, %s29
      // Predicated region
      $region97: #{tpu_custom_call.1} parent=5 // pred_check
        %p1524 = pneg %p1523
      $region98: #{tpu_custom_call.1} parent=5 // pred_check_branch
        %1526 = sbr.rel (%p1524) target = $region100
      $region99: #{tpu_custom_call.1} parent=5 // pred_region
        %s1527 = ssub.s32 %s29, 2
        // Predicated region
        $region101: #{tpu_custom_call.1} parent=99 // pred_check
          %p1528 = pneg %p272
        $region102: #{tpu_custom_call.1} parent=99 // pred_check_branch
          %1530 = sbr.rel (%p1528) target = $region104
        $region103: #{tpu_custom_call.1} parent=99 // pred_region
          %s1531 = sand.u32 %s257, 1
          %s1532 = scalar_lea.sflag [#allocation4], %s1531
          %s1533 = sand.u32 %s257, 1
          %s1534 = smul.addr %s1533, 128
          %s1535 = scalar_lea.vmem [#allocation17], %s1534
          %1536 = dma.done %s1532, 2048
        $region104: #{tpu_custom_call.1} parent=99 // pred_fallthru
          _
      $region100: #{tpu_custom_call.1} parent=5 // pred_fallthru
        _
    $region6: #{tpu_custom_call.1} parent=1 // loop_footer
      %s33 = sadd.s32 1, %s29
    $region7: #{tpu_custom_call.1} parent=1 // loop_footer_branch
      %28 = sbr.rel target = $region3
    $region8: #{tpu_custom_call.1} parent=1 // loop_exit
      _
    %1537 = vsyncpa [#allocation3], 1
    %s1538 = scalar_lea.sflag [#allocation3], 1
    %1539 = vsyncpa %s1538, 1
    %1540 = vsyncpa [#allocation6], 1
    %s1541 = scalar_lea.sflag [#allocation6], 1
    %1542 = vsyncpa %s1541, 1
    %1543 = vsyncpa [#allocation9], 1
    %s1544 = scalar_lea.sflag [#allocation9], 1
    %1545 = vsyncpa %s1544, 1
    %1546 = vsyncpa [#allocation12], 1
    %1547 = vsyncpa [#allocation15], 1
    %1548 = vsyncpa [#allocation4], 1
    %s1549 = scalar_lea.sflag [#allocation4], 1
    %1550 = vsyncpa %s1549, 1

</llo_original>
